<compile_context>
chip_gen: v6e
topology: v6e:2x2x1
jax: 0.10.0
libtpu: 0.0.40
codegen_flags: <defaults>
</compile_context>

<pallas_src>
import functools

import jax
import jax.numpy as jnp
from jax.experimental import pallas as pl
from jax.experimental.pallas import tpu as pltpu  # noqa: F401  (TPU backend)

# ----------------------- configuration (small demo sizes) -----------------------
NSPIN = 8
CELLSIZE = 2
GROUPS = 2
PBC = True
N_RESCH = 32
KERNEL_SIZE = 2
DILATION_DEPTH = 3
DILATION_REPEAT = 1
BATCH = 2

NCELL = NSPIN // CELLSIZE
N_SKIPCH = 2 ** CELLSIZE
DILATIONS = [2 ** i for i in range(DILATION_DEPTH)] * DILATION_REPEAT
NLAYERS = len(DILATIONS)
assert 2 + (KERNEL_SIZE - 1) * sum(DILATIONS) + 1 >= NCELL  # receptive field check

C = N_RESCH
S = N_SKIPCH
GC = GROUPS * C          # group-packed residual channels (lane axis)
GS = GROUPS * S          # group-packed skip channels


def _reorder_indices(nspin, pbc):
    if not pbc:
        return list(range(nspin))
    idx = []
    for i in range(nspin // 2):
        idx += [i, nspin - i - 1]
    if nspin % 2 == 1:
        idx.append(nspin // 2)
    return idx


REORDER_IDX = _reorder_indices(NSPIN, PBC)


# ------------------------------ parameter handling ------------------------------
def init_params(key):
    ks = list(jax.random.split(key, 32))

    def w(shape, scale):
        k = ks.pop(0)
        return scale * jax.random.normal(k, shape, jnp.float32)

    p = {
        "front_w0": w((GROUPS, CELLSIZE, C), 0.3),
        "front_w1": w((GROUPS, CELLSIZE, C), 0.3),
        "front_b": jnp.zeros((GROUPS, 1, C), jnp.float32),
        "layers": [],
        "wh1": w((GROUPS, S, S), 0.3),
        "bh1": jnp.zeros((GROUPS, 1, S), jnp.float32),
        "wh2": w((GROUPS, S, S), 0.3),
        "bh2": 0.5 * jnp.ones((GROUPS, 1, S), jnp.float32),
    }
    for _ in DILATIONS:
        p["layers"].append({
            "wf0": w((GROUPS, C, C), 0.1), "wf1": w((GROUPS, C, C), 0.1),
            "bf": jnp.zeros((GROUPS, 1, C), jnp.float32),
            "wg0": w((GROUPS, C, C), 0.1), "wg1": w((GROUPS, C, C), 0.1),
            "bg": jnp.zeros((GROUPS, 1, C), jnp.float32),
            "wr": w((GROUPS, C, C), 0.1),
            "br": jnp.zeros((GROUPS, 1, C), jnp.float32),
            "ws": w((GROUPS, C, S), 0.1),
            "bs": jnp.zeros((GROUPS, 1, S), jnp.float32),
        })
    return p


def pack_params(p):
    """Pack per-group weights into lane-dense block matrices (done once, on host)."""
    # front conv: same input for every group -> column-stacked [w0; w1] per group.
    w_front = jnp.concatenate(
        [jnp.concatenate([p["front_w0"][g], p["front_w1"][g]], axis=0)
         for g in range(GROUPS)], axis=1)                       # (2*CELLSIZE, GC)
    b_front = p["front_b"][:, 0, :].reshape(1, GC)

    wg_l, bg_l, wrs_l, brs_l = [], [], [], []
    for lp in p["layers"]:
        wg = jnp.zeros((2 * GC, 2 * GC), jnp.float32)           # rows=[hs|h], cols=[f|g]
        wrs = jnp.zeros((GC, GC + GS), jnp.float32)             # cols=[residual|skip]
        for g in range(GROUPS):
            r0, r1 = g * C, (g + 1) * C
            wg = wg.at[r0:r1, r0:r1].set(lp["wf0"][g])                       # hs -> f
            wg = wg.at[GC + r0:GC + r1, r0:r1].set(lp["wf1"][g])             # h  -> f
            wg = wg.at[r0:r1, GC + r0:GC + r1].set(lp["wg0"][g])             # hs -> g
            wg = wg.at[GC + r0:GC + r1, GC + r0:GC + r1].set(lp["wg1"][g])   # h  -> g
            wrs = wrs.at[r0:r1, r0:r1].set(lp["wr"][g])                      # z -> res
            wrs = wrs.at[r0:r1, GC + g * S:GC + (g + 1) * S].set(lp["ws"][g])  # z -> skip
        bg = jnp.concatenate([lp["bf"][:, 0, :].reshape(1, GC),
                              lp["bg"][:, 0, :].reshape(1, GC)], axis=1)     # (1, 2GC)
        brs = jnp.concatenate([lp["br"][:, 0, :].reshape(1, GC),
                               lp["bs"][:, 0, :].reshape(1, GS)], axis=1)    # (1, GC+GS)
        wg_l.append(wg); bg_l.append(bg); wrs_l.append(wrs); brs_l.append(brs)

    def blockdiag(ws):
        m = jnp.zeros((GS, GS), jnp.float32)
        for g in range(GROUPS):
            m = m.at[g * S:(g + 1) * S, g * S:(g + 1) * S].set(ws[g])
        return m

    return {
        "w_front": w_front, "b_front": b_front,
        "w_gate": jnp.stack(wg_l), "b_gate": jnp.stack(bg_l),       # (NL,2GC,2GC),(NL,1,2GC)
        "w_rs": jnp.stack(wrs_l), "b_rs": jnp.stack(brs_l),         # (NL,GC,GC+GS),(NL,1,GC+GS)
        # head stacked into single slabs: index 0 = hidden 1x1, index 1 = output 1x1
        "w_head": jnp.stack([blockdiag(p["wh1"]), blockdiag(p["wh2"])]),        # (2,GS,GS)
        "b_head": jnp.stack([p["bh1"][:, 0, :].reshape(1, GS),
                             p["bh2"][:, 0, :].reshape(1, GS)]),                # (2,1,GS)
    }


# --------------------------------- fused Pallas kernel ---------------------------------
def make_fused_forward(batch):
    """Whole amp_net (front conv + gated stack + head + normalize/select/prod) in one kernel."""
    bl = batch * NCELL           # flattened (batch, cell) rows; channels live on the lane axis

    # distinct in-range shift distances used by the front conv (1, 2) and the layers
    shift_dists = sorted({d for d in ([1, 2] + list(DILATIONS)) if 0 < d < NCELL})

    def kernel(x_ref, oh_ref, lpos_ref,
               wf_ref, bf_ref, wg_ref, bg_ref, wrs_ref, brs_ref,
               wh_ref, bh_ref, o_ref):
        lpos = lpos_ref[...]                                     # (bl, 1) int32: cell index
        # masks hoisted: one compare per distinct shift distance for the whole kernel
        masks = {d: lpos >= d for d in shift_dists}

        def shift_cells(x, d):
            # rows ordered (batch, cell): shift by d cells within each batch element,
            # zero-filling, via sublane concat + per-row mask (no extra HBM copies).
            if d <= 0:
                return x
            if d >= NCELL:
                return jnp.zeros_like(x)
            shifted = jnp.concatenate(
                [jnp.zeros((d, x.shape[1]), x.dtype), x[:bl - d, :]], axis=0)
            return jnp.where(masks[d], shifted, jnp.zeros_like(shifted))

        s_cells = x_ref[...]                                     # (bl, CELLSIZE) raw cells

        # _preprocess (shift by one cell) + causal k=2 tap (one more cell), both in-kernel.
        xc = shift_cells(s_cells, 1)
        xs = shift_cells(s_cells, 2)
        xin = jnp.concatenate([xs, xc], axis=-1)                 # (bl, 2*CELLSIZE)
        h = jnp.dot(xin, wf_ref[...],
                    preferred_element_type=jnp.float32) + bf_ref[...]        # (bl, GC)

        skip = jnp.zeros((bl, GS), jnp.float32)
        for li, d in enumerate(DILATIONS):                       # static unroll (NLAYERS=3)
            bg = bg_ref[li]                                      # (1, 2GC)
            if d >= NCELL:
                # shifted input is identically zero -> drop that half of the K dim.
                fg = jnp.dot(h, wg_ref[li][GC:, :],
                             preferred_element_type=jnp.float32) + bg        # (bl, 2GC)
            else:
                hs = shift_cells(h, d)
                xg = jnp.concatenate([hs, h], axis=-1)           # (bl, 2*GC) lane-dense
                fg = jnp.dot(xg, wg_ref[li],
                             preferred_element_type=jnp.float32) + bg        # (bl, 2GC)
            z = jnp.tanh(fg[:, :GC]) * jax.nn.sigmoid(fg[:, GC:])            # (bl, GC)
            rs = jnp.dot(z, wrs_ref[li],
                         preferred_element_type=jnp.float32) + brs_ref[li]   # (bl, GC+GS)
            h = h + rs[:, :GC]
            skip = skip + rs[:, GC:]

        # head: relu -> 1x1 -> relu -> 1x1 (block-diagonal over groups)
        hk = jnp.maximum(skip, 0.0)
        hk = jnp.maximum(jnp.dot(hk, wh_ref[0],
                                 preferred_element_type=jnp.float32) + bh_ref[0], 0.0)
        amp = jnp.dot(hk, wh_ref[1],
                      preferred_element_type=jnp.float32) + bh_ref[1]        # (bl, GS)

        # _postprocess (L2-normalize over 2^cellsize; sz_sum=None so mask == 1,
        # no eps, matching the reference) + _select (one-hot gather).
        oh = oh_ref[...]                                         # (bl, S), shared by groups
        sel_cols = []
        for g in range(GROUPS):
            a = amp[:, g * S:(g + 1) * S]
            inv = jax.lax.rsqrt(jnp.sum(a * a, axis=-1, keepdims=True))
            sel_cols.append(jnp.sum(a * oh, axis=-1, keepdims=True) * inv)
        sel = jnp.concatenate(sel_cols, axis=-1)                 # (bl, GROUPS)

        # product over cells of each batch element -> (batch, GROUPS); pairwise tree
        rows = []
        for b in range(batch):
            segs = [sel[b * NCELL + l:b * NCELL + l + 1, :] for l in range(NCELL)]
            while len(segs) > 1:
                nxt = [segs[i] * segs[i + 1] for i in range(0, len(segs) - 1, 2)]
                if len(segs) % 2:
                    nxt.append(segs[-1])
                segs = nxt
            rows.append(segs[0])
        o_ref[...] = jnp.concatenate(rows, axis=0)               # (batch, GROUPS)

    return pl.pallas_call(
        kernel,
        out_shape=jax.ShapeDtypeStruct((batch, GROUPS), jnp.float32),
    )


# -------------------------------- model forward (JAX glue) ------------------------------
def spectral_net_forward(packed, basis_input):
    """Equivalent of spectral_net.forward: returns (psi_r, psi_i), each (groups, batch)."""
    # reassign_config + reorder
    cfg = basis_input.astype(jnp.int32)[:, jnp.array(REORDER_IDX)]     # (B, nspin), +-1
    b = cfg.shape[0]
    bl = b * NCELL

    # raw cells, flattened to (batch*cell, cellsize); all shifting happens in-kernel
    s_cells = cfg.astype(jnp.float32).reshape(bl, CELLSIZE)

    # _select index: bit2integer((1 - spin)/2), MSB-first per cell -> one-hot (no G broadcast)
    bits = ((1 - cfg) // 2).reshape(bl, CELLSIZE)
    weights = 2 ** jnp.arange(CELLSIZE - 1, -1, -1, dtype=jnp.int32)
    sel_idx = jnp.sum(bits * weights, axis=-1)                         # (bl,)
    onehot = jax.nn.one_hot(sel_idx, N_SKIPCH, dtype=jnp.float32)      # (bl, S)

    # intra-batch cell index of each flattened row (constant; folded under jit)
    lpos = (jnp.arange(bl, dtype=jnp.int32) % NCELL).reshape(bl, 1)

    fused = make_fused_forward(b)
    psi_bg = fused(s_cells, onehot, lpos,
                   packed["w_front"], packed["b_front"],
                   packed["w_gate"], packed["b_gate"],
                   packed["w_rs"], packed["b_rs"],
                   packed["w_head"], packed["b_head"])                 # (B, G)

    psi_r = psi_bg.T                                                   # (G, B)
    psi_i = jnp.zeros_like(psi_r)
    return psi_r, psi_i


# -------------------------- pure-JAX reference (correctness check) --------------------------
def reference_forward(params, basis_input):
    cfg = basis_input.astype(jnp.int32)[:, jnp.array(REORDER_IDX)]
    b = cfg.shape[0]
    s = cfg.astype(jnp.float32).reshape(b, NCELL, CELLSIZE)
    x = jnp.concatenate([jnp.zeros((b, 1, CELLSIZE), jnp.float32), s[:, :-1, :]], axis=1)

    def shift(t, d):
        if d >= NCELL:
            return jnp.zeros_like(t)
        return jnp.concatenate([jnp.zeros_like(t[:, :d]), t[:, :NCELL - d]], axis=1)

    bits = ((1 - cfg) // 2).reshape(b, NCELL, CELLSIZE)
    w = 2 ** jnp.arange(CELLSIZE - 1, -1, -1, dtype=jnp.int32)
    idx = jnp.sum(bits * w, axis=-1)

    psi = []
    for g in range(GROUPS):
        h = (shift(x, 1) @ params["front_w0"][g] + x @ params["front_w1"][g]
             + params["front_b"][g])
        skip = 0.0
        for d, lp in zip(DILATIONS, params["layers"]):
            hs = shift(h, d)
            f = hs @ lp["wf0"][g] + h @ lp["wf1"][g] + lp["bf"][g]
            gg = hs @ lp["wg0"][g] + h @ lp["wg1"][g] + lp["bg"][g]
            z = jnp.tanh(f) * jax.nn.sigmoid(gg)
            h = h + z @ lp["wr"][g] + lp["br"][g]
            skip = skip + z @ lp["ws"][g] + lp["bs"][g]
        hk = jnp.maximum(skip, 0.0)
        hk = jnp.maximum(hk @ params["wh1"][g] + params["bh1"][g], 0.0)
        amp = hk @ params["wh2"][g] + params["bh2"][g]                 # (B, L, S)
        amp = amp / jnp.sqrt(jnp.sum(amp * amp, axis=-1, keepdims=True))
        sel = jnp.take_along_axis(amp, idx[..., None], axis=-1)[..., 0]
        psi.append(jnp.prod(sel, axis=-1))
    return jnp.stack(psi, axis=0)                                      # (G, B)


# -------------------------------------- main --------------------------------------
if __name__ == "__main__":
    key = jax.random.PRNGKey(0)
    k_in, k_par = jax.random.split(key)
    params = init_params(k_par)
    packed = pack_params(params)

    # spin configurations in {-1, +1}
    spins = 1 - 2 * jax.random.bernoulli(k_in, 0.5, (BATCH, NSPIN)).astype(jnp.int32)

    fwd = jax.jit(functools.partial(spectral_net_forward, packed))
    psi_r, psi_i = fwd(spins)
    jax.block_until_ready((psi_r, psi_i))

    assert psi_r.shape == (GROUPS, BATCH) and psi_i.shape == (GROUPS, BATCH)
    assert bool(jnp.all(jnp.isfinite(psi_r)))

    ref_r = reference_forward(params, spins)
    assert bool(jnp.allclose(psi_r, ref_r, rtol=1e-3, atol=1e-4)), (psi_r, ref_r)

    print("KERNEL_OK")
</pallas_src>

<mosaic_0001>
module attributes {stable_mosaic.version = 11 : i64} {
  func.func @kernel(%arg0: memref<8x2xf32, #tpu.memory_space<vmem>>, %arg1: memref<8x4xf32, #tpu.memory_space<vmem>>, %arg2: memref<8x1xi32, #tpu.memory_space<vmem>>, %arg3: memref<4x64xf32, #tpu.memory_space<vmem>>, %arg4: memref<1x64xf32, #tpu.memory_space<vmem>>, %arg5: memref<3x128x128xf32, #tpu.memory_space<vmem>>, %arg6: memref<3x1x128xf32, #tpu.memory_space<vmem>>, %arg7: memref<3x64x72xf32, #tpu.memory_space<vmem>>, %arg8: memref<3x1x72xf32, #tpu.memory_space<vmem>>, %arg9: memref<2x8x8xf32, #tpu.memory_space<vmem>>, %arg10: memref<2x1x8xf32, #tpu.memory_space<vmem>>, %arg11: memref<2x2xf32, #tpu.memory_space<vmem>>) attributes {dimension_semantics = [], scalar_prefetch = 0 : i64, scratch_operands = 0 : i64, tpu.core_type = #tpu.core_type<tc>} {
    %c0 = arith.constant 0 : index
    %c0_0 = arith.constant 0 : index
    %0 = vector.load %arg2[%c0, %c0_0] : memref<8x1xi32, #tpu.memory_space<vmem>>, vector<8x1xi32>
    %c1_i32 = arith.constant 1 : i32
    %1 = vector.broadcast %c1_i32 : i32 to vector<8x1xi32>
    %2 = arith.cmpi sge, %0, %1 : vector<8x1xi32>
    %c2_i32 = arith.constant 2 : i32
    %3 = vector.broadcast %c2_i32 : i32 to vector<8x1xi32>
    %4 = arith.cmpi sge, %0, %3 : vector<8x1xi32>
    %c0_1 = arith.constant 0 : index
    %c0_2 = arith.constant 0 : index
    %5 = vector.load %arg0[%c0_1, %c0_2] : memref<8x2xf32, #tpu.memory_space<vmem>>, vector<8x2xf32>
    %cst = arith.constant 0.000000e+00 : f32
    %6 = vector.broadcast %cst : f32 to vector<1x2xf32>
    %7 = vector.extract_strided_slice %5 {offsets = [0, 0], sizes = [7, 2], strides = [1, 1]} : vector<8x2xf32> to vector<7x2xf32>
    %8 = tpu.concatenate %6, %7 in 0 : vector<1x2xf32>, vector<7x2xf32> -> vector<8x2xf32>
    %cst_3 = arith.constant 0.000000e+00 : f32
    %9 = vector.broadcast %cst_3 : f32 to vector<8x2xf32>
    %10 = vector.shape_cast %2 : vector<8x1xi1> to vector<8x1xi1>
    %11 = vector.broadcast %10 : vector<8x1xi1> to vector<8x2xi1>
    %12 = arith.select %11, %8, %9 : vector<8x2xi1>, vector<8x2xf32>
    %cst_4 = arith.constant 0.000000e+00 : f32
    %13 = vector.broadcast %cst_4 : f32 to vector<2x2xf32>
    %14 = vector.extract_strided_slice %5 {offsets = [0, 0], sizes = [6, 2], strides = [1, 1]} : vector<8x2xf32> to vector<6x2xf32>
    %15 = tpu.concatenate %13, %14 in 0 : vector<2x2xf32>, vector<6x2xf32> -> vector<8x2xf32>
    %cst_5 = arith.constant 0.000000e+00 : f32
    %16 = vector.broadcast %cst_5 : f32 to vector<8x2xf32>
    %17 = vector.shape_cast %4 : vector<8x1xi1> to vector<8x1xi1>
    %18 = vector.broadcast %17 : vector<8x1xi1> to vector<8x2xi1>
    %19 = arith.select %18, %15, %16 : vector<8x2xi1>, vector<8x2xf32>
    %20 = tpu.concatenate %19, %12 in 1 : vector<8x2xf32>, vector<8x2xf32> -> vector<8x4xf32>
    %c0_6 = arith.constant 0 : index
    %c0_7 = arith.constant 0 : index
    %21 = vector.load %arg3[%c0_6, %c0_7] : memref<4x64xf32, #tpu.memory_space<vmem>>, vector<4x64xf32>
    %cst_8 = arith.constant dense<0.000000e+00> : vector<8x64xf32>
    %22 = tpu.matmul %20, %21, %cst_8 {dimension_numbers = #tpu.dot_dimension_numbers<[1], [0], [0], [1], [0, 0, 1, 1], [], []>} : vector<8x4xf32>, vector<4x64xf32>, vector<8x64xf32> -> vector<8x64xf32>
    %c0_9 = arith.constant 0 : index
    %c0_10 = arith.constant 0 : index
    %23 = vector.load %arg4[%c0_9, %c0_10] : memref<1x64xf32, #tpu.memory_space<vmem>>, vector<1x64xf32>
    %24 = vector.broadcast %23 : vector<1x64xf32> to vector<8x64xf32>
    %25 = arith.addf %22, %24 : vector<8x64xf32>
    %cst_11 = arith.constant 0.000000e+00 : f32
    %26 = vector.broadcast %cst_11 : f32 to vector<8x8xf32>
    %c0_12 = arith.constant 0 : index
    %c0_13 = arith.constant 0 : index
    %c0_14 = arith.constant 0 : index
    %27 = vector.load %arg6[%c0_12, %c0_13, %c0_14] : memref<3x1x128xf32, #tpu.memory_space<vmem>>, vector<1x1x128xf32>
    %28 = vector.shape_cast %27 : vector<1x1x128xf32> to vector<1x128xf32>
    %cst_15 = arith.constant 0.000000e+00 : f32
    %29 = vector.broadcast %cst_15 : f32 to vector<1x64xf32>
    %30 = vector.extract_strided_slice %25 {offsets = [0, 0], sizes = [7, 64], strides = [1, 1]} : vector<8x64xf32> to vector<7x64xf32>
    %31 = tpu.concatenate %29, %30 in 0 : vector<1x64xf32>, vector<7x64xf32> -> vector<8x64xf32>
    %cst_16 = arith.constant 0.000000e+00 : f32
    %32 = vector.broadcast %cst_16 : f32 to vector<8x64xf32>
    %33 = vector.shape_cast %2 : vector<8x1xi1> to vector<8x1xi1>
    %34 = vector.broadcast %33 : vector<8x1xi1> to vector<8x64xi1>
    %35 = arith.select %34, %31, %32 : vector<8x64xi1>, vector<8x64xf32>
    %36 = tpu.concatenate %35, %25 in 1 : vector<8x64xf32>, vector<8x64xf32> -> vector<8x128xf32>
    %c0_17 = arith.constant 0 : index
    %c0_18 = arith.constant 0 : index
    %c0_19 = arith.constant 0 : index
    %37 = vector.load %arg5[%c0_17, %c0_18, %c0_19] : memref<3x128x128xf32, #tpu.memory_space<vmem>>, vector<1x128x128xf32>
    %38 = vector.shape_cast %37 : vector<1x128x128xf32> to vector<128x128xf32>
    %cst_20 = arith.constant dense<0.000000e+00> : vector<8x128xf32>
    %39 = tpu.matmul %36, %38, %cst_20 {dimension_numbers = #tpu.dot_dimension_numbers<[1], [0], [0], [1], [0, 0, 1, 1], [], []>} : vector<8x128xf32>, vector<128x128xf32>, vector<8x128xf32> -> vector<8x128xf32>
    %40 = vector.broadcast %28 : vector<1x128xf32> to vector<8x128xf32>
    %41 = arith.addf %39, %40 : vector<8x128xf32>
    %42 = vector.extract_strided_slice %41 {offsets = [0, 0], sizes = [8, 64], strides = [1, 1]} : vector<8x128xf32> to vector<8x64xf32>
    %43 = math.tanh %42 : vector<8x64xf32>
    %44 = vector.extract_strided_slice %41 {offsets = [0, 64], sizes = [8, 64], strides = [1, 1]} : vector<8x128xf32> to vector<8x64xf32>
    %45 = arith.negf %44 : vector<8x64xf32>
    %46 = math.exp %45 : vector<8x64xf32>
    %cst_21 = arith.constant 1.000000e+00 : f32
    %47 = vector.broadcast %cst_21 : f32 to vector<8x64xf32>
    %48 = arith.addf %47, %46 : vector<8x64xf32>
    %49 = arith.divf %47, %48 : vector<8x64xf32>
    %50 = arith.mulf %43, %49 : vector<8x64xf32>
    %c0_22 = arith.constant 0 : index
    %c0_23 = arith.constant 0 : index
    %c0_24 = arith.constant 0 : index
    %51 = vector.load %arg7[%c0_22, %c0_23, %c0_24] : memref<3x64x72xf32, #tpu.memory_space<vmem>>, vector<1x64x72xf32>
    %52 = vector.shape_cast %51 : vector<1x64x72xf32> to vector<64x72xf32>
    %cst_25 = arith.constant dense<0.000000e+00> : vector<8x72xf32>
    %53 = tpu.matmul %50, %52, %cst_25 {dimension_numbers = #tpu.dot_dimension_numbers<[1], [0], [0], [1], [0, 0, 1, 1], [], []>} : vector<8x64xf32>, vector<64x72xf32>, vector<8x72xf32> -> vector<8x72xf32>
    %c0_26 = arith.constant 0 : index
    %c0_27 = arith.constant 0 : index
    %c0_28 = arith.constant 0 : index
    %54 = vector.load %arg8[%c0_26, %c0_27, %c0_28] : memref<3x1x72xf32, #tpu.memory_space<vmem>>, vector<1x1x72xf32>
    %55 = vector.shape_cast %54 : vector<1x1x72xf32> to vector<1x72xf32>
    %56 = vector.broadcast %55 : vector<1x72xf32> to vector<8x72xf32>
    %57 = arith.addf %53, %56 : vector<8x72xf32>
    %58 = vector.extract_strided_slice %57 {offsets = [0, 0], sizes = [8, 64], strides = [1, 1]} : vector<8x72xf32> to vector<8x64xf32>
    %59 = arith.addf %25, %58 : vector<8x64xf32>
    %60 = vector.extract_strided_slice %57 {offsets = [0, 64], sizes = [8, 8], strides = [1, 1]} : vector<8x72xf32> to vector<8x8xf32>
    %61 = arith.addf %26, %60 : vector<8x8xf32>
    %c1 = arith.constant 1 : index
    %c0_29 = arith.constant 0 : index
    %c0_30 = arith.constant 0 : index
    %62 = vector.load %arg6[%c1, %c0_29, %c0_30] : memref<3x1x128xf32, #tpu.memory_space<vmem>>, vector<1x1x128xf32>
    %63 = vector.shape_cast %62 : vector<1x1x128xf32> to vector<1x128xf32>
    %cst_31 = arith.constant 0.000000e+00 : f32
    %64 = vector.broadcast %cst_31 : f32 to vector<2x64xf32>
    %65 = vector.extract_strided_slice %59 {offsets = [0, 0], sizes = [6, 64], strides = [1, 1]} : vector<8x64xf32> to vector<6x64xf32>
    %66 = tpu.concatenate %64, %65 in 0 : vector<2x64xf32>, vector<6x64xf32> -> vector<8x64xf32>
    %cst_32 = arith.constant 0.000000e+00 : f32
    %67 = vector.broadcast %cst_32 : f32 to vector<8x64xf32>
    %68 = vector.shape_cast %4 : vector<8x1xi1> to vector<8x1xi1>
    %69 = vector.broadcast %68 : vector<8x1xi1> to vector<8x64xi1>
    %70 = arith.select %69, %66, %67 : vector<8x64xi1>, vector<8x64xf32>
    %71 = tpu.concatenate %70, %59 in 1 : vector<8x64xf32>, vector<8x64xf32> -> vector<8x128xf32>
    %c1_33 = arith.constant 1 : index
    %c0_34 = arith.constant 0 : index
    %c0_35 = arith.constant 0 : index
    %72 = vector.load %arg5[%c1_33, %c0_34, %c0_35] : memref<3x128x128xf32, #tpu.memory_space<vmem>>, vector<1x128x128xf32>
    %73 = vector.shape_cast %72 : vector<1x128x128xf32> to vector<128x128xf32>
    %cst_36 = arith.constant dense<0.000000e+00> : vector<8x128xf32>
    %74 = tpu.matmul %71, %73, %cst_36 {dimension_numbers = #tpu.dot_dimension_numbers<[1], [0], [0], [1], [0, 0, 1, 1], [], []>} : vector<8x128xf32>, vector<128x128xf32>, vector<8x128xf32> -> vector<8x128xf32>
    %75 = vector.broadcast %63 : vector<1x128xf32> to vector<8x128xf32>
    %76 = arith.addf %74, %75 : vector<8x128xf32>
    %77 = vector.extract_strided_slice %76 {offsets = [0, 0], sizes = [8, 64], strides = [1, 1]} : vector<8x128xf32> to vector<8x64xf32>
    %78 = math.tanh %77 : vector<8x64xf32>
    %79 = vector.extract_strided_slice %76 {offsets = [0, 64], sizes = [8, 64], strides = [1, 1]} : vector<8x128xf32> to vector<8x64xf32>
    %80 = arith.negf %79 : vector<8x64xf32>
    %81 = math.exp %80 : vector<8x64xf32>
    %cst_37 = arith.constant 1.000000e+00 : f32
    %82 = vector.broadcast %cst_37 : f32 to vector<8x64xf32>
    %83 = arith.addf %82, %81 : vector<8x64xf32>
    %84 = arith.divf %82, %83 : vector<8x64xf32>
    %85 = arith.mulf %78, %84 : vector<8x64xf32>
    %c1_38 = arith.constant 1 : index
    %c0_39 = arith.constant 0 : index
    %c0_40 = arith.constant 0 : index
    %86 = vector.load %arg7[%c1_38, %c0_39, %c0_40] : memref<3x64x72xf32, #tpu.memory_space<vmem>>, vector<1x64x72xf32>
    %87 = vector.shape_cast %86 : vector<1x64x72xf32> to vector<64x72xf32>
    %cst_41 = arith.constant dense<0.000000e+00> : vector<8x72xf32>
    %88 = tpu.matmul %85, %87, %cst_41 {dimension_numbers = #tpu.dot_dimension_numbers<[1], [0], [0], [1], [0, 0, 1, 1], [], []>} : vector<8x64xf32>, vector<64x72xf32>, vector<8x72xf32> -> vector<8x72xf32>
    %c1_42 = arith.constant 1 : index
    %c0_43 = arith.constant 0 : index
    %c0_44 = arith.constant 0 : index
    %89 = vector.load %arg8[%c1_42, %c0_43, %c0_44] : memref<3x1x72xf32, #tpu.memory_space<vmem>>, vector<1x1x72xf32>
    %90 = vector.shape_cast %89 : vector<1x1x72xf32> to vector<1x72xf32>
    %91 = vector.broadcast %90 : vector<1x72xf32> to vector<8x72xf32>
    %92 = arith.addf %88, %91 : vector<8x72xf32>
    %93 = vector.extract_strided_slice %92 {offsets = [0, 0], sizes = [8, 64], strides = [1, 1]} : vector<8x72xf32> to vector<8x64xf32>
    %94 = arith.addf %59, %93 : vector<8x64xf32>
    %95 = vector.extract_strided_slice %92 {offsets = [0, 64], sizes = [8, 8], strides = [1, 1]} : vector<8x72xf32> to vector<8x8xf32>
    %96 = arith.addf %61, %95 : vector<8x8xf32>
    %c2 = arith.constant 2 : index
    %c0_45 = arith.constant 0 : index
    %c0_46 = arith.constant 0 : index
    %97 = vector.load %arg6[%c2, %c0_45, %c0_46] : memref<3x1x128xf32, #tpu.memory_space<vmem>>, vector<1x1x128xf32>
    %98 = vector.shape_cast %97 : vector<1x1x128xf32> to vector<1x128xf32>
    %c2_47 = arith.constant 2 : index
    %c0_48 = arith.constant 0 : index
    %c0_49 = arith.constant 0 : index
    %99 = vector.load %arg5[%c2_47, %c0_48, %c0_49] : memref<3x128x128xf32, #tpu.memory_space<vmem>>, vector<1x128x128xf32>
    %100 = vector.shape_cast %99 : vector<1x128x128xf32> to vector<128x128xf32>
    %101 = vector.extract_strided_slice %100 {offsets = [64, 0], sizes = [64, 128], strides = [1, 1]} : vector<128x128xf32> to vector<64x128xf32>
    %cst_50 = arith.constant dense<0.000000e+00> : vector<8x128xf32>
    %102 = tpu.matmul %94, %101, %cst_50 {dimension_numbers = #tpu.dot_dimension_numbers<[1], [0], [0], [1], [0, 0, 1, 1], [], []>} : vector<8x64xf32>, vector<64x128xf32>, vector<8x128xf32> -> vector<8x128xf32>
    %103 = vector.broadcast %98 : vector<1x128xf32> to vector<8x128xf32>
    %104 = arith.addf %102, %103 : vector<8x128xf32>
    %105 = vector.extract_strided_slice %104 {offsets = [0, 0], sizes = [8, 64], strides = [1, 1]} : vector<8x128xf32> to vector<8x64xf32>
    %106 = math.tanh %105 : vector<8x64xf32>
    %107 = vector.extract_strided_slice %104 {offsets = [0, 64], sizes = [8, 64], strides = [1, 1]} : vector<8x128xf32> to vector<8x64xf32>
    %108 = arith.negf %107 : vector<8x64xf32>
    %109 = math.exp %108 : vector<8x64xf32>
    %cst_51 = arith.constant 1.000000e+00 : f32
    %110 = vector.broadcast %cst_51 : f32 to vector<8x64xf32>
    %111 = arith.addf %110, %109 : vector<8x64xf32>
    %112 = arith.divf %110, %111 : vector<8x64xf32>
    %113 = arith.mulf %106, %112 : vector<8x64xf32>
    %c2_52 = arith.constant 2 : index
    %c0_53 = arith.constant 0 : index
    %c0_54 = arith.constant 0 : index
    %114 = vector.load %arg7[%c2_52, %c0_53, %c0_54] : memref<3x64x72xf32, #tpu.memory_space<vmem>>, vector<1x64x72xf32>
    %115 = vector.shape_cast %114 : vector<1x64x72xf32> to vector<64x72xf32>
    %cst_55 = arith.constant dense<0.000000e+00> : vector<8x72xf32>
    %116 = tpu.matmul %113, %115, %cst_55 {dimension_numbers = #tpu.dot_dimension_numbers<[1], [0], [0], [1], [0, 0, 1, 1], [], []>} : vector<8x64xf32>, vector<64x72xf32>, vector<8x72xf32> -> vector<8x72xf32>
    %c2_56 = arith.constant 2 : index
    %c0_57 = arith.constant 0 : index
    %c0_58 = arith.constant 0 : index
    %117 = vector.load %arg8[%c2_56, %c0_57, %c0_58] : memref<3x1x72xf32, #tpu.memory_space<vmem>>, vector<1x1x72xf32>
    %118 = vector.shape_cast %117 : vector<1x1x72xf32> to vector<1x72xf32>
    %119 = vector.broadcast %118 : vector<1x72xf32> to vector<8x72xf32>
    %120 = arith.addf %116, %119 : vector<8x72xf32>
    %121 = vector.extract_strided_slice %120 {offsets = [0, 64], sizes = [8, 8], strides = [1, 1]} : vector<8x72xf32> to vector<8x8xf32>
    %122 = arith.addf %96, %121 : vector<8x8xf32>
    %cst_59 = arith.constant 0.000000e+00 : f32
    %123 = vector.broadcast %cst_59 : f32 to vector<8x8xf32>
    %124 = arith.maximumf %122, %123 : vector<8x8xf32>
    %c0_60 = arith.constant 0 : index
    %c0_61 = arith.constant 0 : index
    %c0_62 = arith.constant 0 : index
    %125 = vector.load %arg9[%c0_60, %c0_61, %c0_62] : memref<2x8x8xf32, #tpu.memory_space<vmem>>, vector<1x8x8xf32>
    %126 = vector.shape_cast %125 : vector<1x8x8xf32> to vector<8x8xf32>
    %cst_63 = arith.constant dense<0.000000e+00> : vector<8x8xf32>
    %127 = tpu.matmul %124, %126, %cst_63 {dimension_numbers = #tpu.dot_dimension_numbers<[1], [0], [0], [1], [0, 0, 1, 1], [], []>} : vector<8x8xf32>, vector<8x8xf32>, vector<8x8xf32> -> vector<8x8xf32>
    %c0_64 = arith.constant 0 : index
    %c0_65 = arith.constant 0 : index
    %c0_66 = arith.constant 0 : index
    %128 = vector.load %arg10[%c0_64, %c0_65, %c0_66] : memref<2x1x8xf32, #tpu.memory_space<vmem>>, vector<1x1x8xf32>
    %129 = vector.shape_cast %128 : vector<1x1x8xf32> to vector<1x8xf32>
    %130 = vector.broadcast %129 : vector<1x8xf32> to vector<8x8xf32>
    %131 = arith.addf %127, %130 : vector<8x8xf32>
    %cst_67 = arith.constant 0.000000e+00 : f32
    %132 = vector.broadcast %cst_67 : f32 to vector<8x8xf32>
    %133 = arith.maximumf %131, %132 : vector<8x8xf32>
    %c1_68 = arith.constant 1 : index
    %c0_69 = arith.constant 0 : index
    %c0_70 = arith.constant 0 : index
    %134 = vector.load %arg9[%c1_68, %c0_69, %c0_70] : memref<2x8x8xf32, #tpu.memory_space<vmem>>, vector<1x8x8xf32>
    %135 = vector.shape_cast %134 : vector<1x8x8xf32> to vector<8x8xf32>
    %cst_71 = arith.constant dense<0.000000e+00> : vector<8x8xf32>
    %136 = tpu.matmul %133, %135, %cst_71 {dimension_numbers = #tpu.dot_dimension_numbers<[1], [0], [0], [1], [0, 0, 1, 1], [], []>} : vector<8x8xf32>, vector<8x8xf32>, vector<8x8xf32> -> vector<8x8xf32>
    %c1_72 = arith.constant 1 : index
    %c0_73 = arith.constant 0 : index
    %c0_74 = arith.constant 0 : index
    %137 = vector.load %arg10[%c1_72, %c0_73, %c0_74] : memref<2x1x8xf32, #tpu.memory_space<vmem>>, vector<1x1x8xf32>
    %138 = vector.shape_cast %137 : vector<1x1x8xf32> to vector<1x8xf32>
    %139 = vector.broadcast %138 : vector<1x8xf32> to vector<8x8xf32>
    %140 = arith.addf %136, %139 : vector<8x8xf32>
    %c0_75 = arith.constant 0 : index
    %c0_76 = arith.constant 0 : index
    %141 = vector.load %arg1[%c0_75, %c0_76] : memref<8x4xf32, #tpu.memory_space<vmem>>, vector<8x4xf32>
    %142 = vector.extract_strided_slice %140 {offsets = [0, 0], sizes = [8, 4], strides = [1, 1]} : vector<8x8xf32> to vector<8x4xf32>
    %143 = arith.mulf %142, %142 : vector<8x4xf32>
    %cst_77 = arith.constant dense<0.000000e+00> : vector<8xf32>
    %144 = vector.multi_reduction <add>, %143, %cst_77 [1] : vector<8x4xf32> to vector<8xf32>
    %145 = vector.shape_cast %144 : vector<8xf32> to vector<8x1xf32>
    %146 = math.rsqrt %145 : vector<8x1xf32>
    %147 = arith.mulf %142, %141 : vector<8x4xf32>
    %cst_78 = arith.constant dense<0.000000e+00> : vector<8xf32>
    %148 = vector.multi_reduction <add>, %147, %cst_78 [1] : vector<8x4xf32> to vector<8xf32>
    %149 = vector.shape_cast %148 : vector<8xf32> to vector<8x1xf32>
    %150 = arith.mulf %149, %146 : vector<8x1xf32>
    %151 = vector.extract_strided_slice %140 {offsets = [0, 4], sizes = [8, 4], strides = [1, 1]} : vector<8x8xf32> to vector<8x4xf32>
    %152 = arith.mulf %151, %151 : vector<8x4xf32>
    %cst_79 = arith.constant dense<0.000000e+00> : vector<8xf32>
    %153 = vector.multi_reduction <add>, %152, %cst_79 [1] : vector<8x4xf32> to vector<8xf32>
    %154 = vector.shape_cast %153 : vector<8xf32> to vector<8x1xf32>
    %155 = math.rsqrt %154 : vector<8x1xf32>
    %156 = arith.mulf %151, %141 : vector<8x4xf32>
    %cst_80 = arith.constant dense<0.000000e+00> : vector<8xf32>
    %157 = vector.multi_reduction <add>, %156, %cst_80 [1] : vector<8x4xf32> to vector<8xf32>
    %158 = vector.shape_cast %157 : vector<8xf32> to vector<8x1xf32>
    %159 = arith.mulf %158, %155 : vector<8x1xf32>
    %160 = tpu.concatenate %150, %159 in 1 : vector<8x1xf32>, vector<8x1xf32> -> vector<8x2xf32>
    %161 = vector.extract_strided_slice %160 {offsets = [0, 0], sizes = [1, 2], strides = [1, 1]} : vector<8x2xf32> to vector<1x2xf32>
    %162 = vector.extract_strided_slice %160 {offsets = [1, 0], sizes = [1, 2], strides = [1, 1]} : vector<8x2xf32> to vector<1x2xf32>
    %163 = vector.extract_strided_slice %160 {offsets = [2, 0], sizes = [1, 2], strides = [1, 1]} : vector<8x2xf32> to vector<1x2xf32>
    %164 = vector.extract_strided_slice %160 {offsets = [3, 0], sizes = [1, 2], strides = [1, 1]} : vector<8x2xf32> to vector<1x2xf32>
    %165 = arith.mulf %161, %162 : vector<1x2xf32>
    %166 = arith.mulf %163, %164 : vector<1x2xf32>
    %167 = arith.mulf %165, %166 : vector<1x2xf32>
    %168 = vector.extract_strided_slice %160 {offsets = [4, 0], sizes = [1, 2], strides = [1, 1]} : vector<8x2xf32> to vector<1x2xf32>
    %169 = vector.extract_strided_slice %160 {offsets = [5, 0], sizes = [1, 2], strides = [1, 1]} : vector<8x2xf32> to vector<1x2xf32>
    %170 = vector.extract_strided_slice %160 {offsets = [6, 0], sizes = [1, 2], strides = [1, 1]} : vector<8x2xf32> to vector<1x2xf32>
    %171 = vector.extract_strided_slice %160 {offsets = [7, 0], sizes = [1, 2], strides = [1, 1]} : vector<8x2xf32> to vector<1x2xf32>
    %172 = arith.mulf %168, %169 : vector<1x2xf32>
    %173 = arith.mulf %170, %171 : vector<1x2xf32>
    %174 = arith.mulf %172, %173 : vector<1x2xf32>
    %175 = tpu.concatenate %167, %174 in 0 : vector<1x2xf32>, vector<1x2xf32> -> vector<2x2xf32>
    %c0_81 = arith.constant 0 : index
    %c0_82 = arith.constant 0 : index
    %176 = vector.load %arg11[%c0_81, %c0_82] : memref<2x2xf32, #tpu.memory_space<vmem>>, vector<2x2xf32>
    tpu.vector_store %arg11[%c0_81, %c0_82], %175 {strides = array<i32>} : memref<2x2xf32, #tpu.memory_space<vmem>>, vector<2x2xf32>,
    return
  }
}

</mosaic_0001>

<llo_original>
// kernel: spectral_net_forward.1
$region0: #{spectral_net_forward.1}
  #allocation0 [shape = 'u32[]', space=smem, size = 0x4, offset = 0x4, fixed_abs, tag = 'smem constant byte address 0x4 - core index']
  #allocation1 [shape = 'u32[144,128]{1,0:T(1,128)}', space=vmem, size = 0x12000, scoped, tag = 'internal scratch']
  %s0 = inlined_call_operand.vmem [shape: f32[8,2], index: 0, kind: input, shape index: {}]
  %s1 = inlined_call_operand.vmem [shape: f32[8,4], index: 1, kind: input, shape index: {}]
  %s2 = inlined_call_operand.vmem [shape: s32[8,1], index: 2, kind: input, shape index: {}]
  %s3 = inlined_call_operand.vmem [shape: f32[4,64], index: 3, kind: input, shape index: {}]
  %s4 = inlined_call_operand.vmem [shape: f32[1,64], index: 4, kind: input, shape index: {}]
  %s5 = inlined_call_operand.hbm [shape: f32[3,128,128], index: 5, kind: input, shape index: {}]
  %s6 = inlined_call_operand.vmem [shape: f32[3,1,128], index: 6, kind: input, shape index: {}]
  %s7 = inlined_call_operand.hbm [shape: f32[3,64,72], index: 7, kind: input, shape index: {}]
  %s8 = inlined_call_operand.vmem [shape: f32[3,1,72], index: 8, kind: input, shape index: {}]
  %s9 = inlined_call_operand.vmem [shape: f32[2,8,8], index: 9, kind: input, shape index: {}]
  %s10 = inlined_call_operand.vmem [shape: f32[2,1,8], index: 10, kind: input, shape index: {}]
  %s11 = inlined_call_operand.vmem [shape: f32[2,2], index: 11, kind: output, shape index: {}]
  %s12 = sld [smem:[#allocation0]]
  $region62: #{spectral_net_forward.1} parent=0
    _
  %s14 = ssub.s32 1, %s12
  %s15 = scalar_select 0, %s14, %s12
  $region1: #{spectral_net_forward.1} parent=0
    #allocation2 [shape = 'u8[196608]{0}', space=vmem, size = 0x30000, scoped, tag = 'input window, operand 5, single buffered']
    #allocation3 [shape = 's32[1]{0}', space=sflag, size = 0x4, scoped, tag = 'scoped memory for spectral_net_forward.1']
    #allocation4 [shape = 'u8[98304]{0}', space=vmem, size = 0x18000, scoped, tag = 'input window, operand 7, single buffered']
    #allocation5 [shape = 's32[1]{0}', space=sflag, size = 0x4, scoped, tag = 'scoped memory for spectral_net_forward.1']
    %16 = vsyncpa [#allocation3], 0
    %17 = vsyncpa [#allocation5], 0
    // Predicated region
    $region2: #{spectral_net_forward.1} parent=1 // pred_check
      _
    $region3: #{spectral_net_forward.1} parent=1 // pred_check_branch
      %19 = sbr.rel (0) target = $region5
    $region4: #{spectral_net_forward.1} parent=1 // pred_region
      _
    $region5: #{spectral_net_forward.1} parent=1 // pred_fallthru
      _
    // Predicated region
    $region6: #{spectral_net_forward.1} parent=1 // pred_check
      _
    $region7: #{spectral_net_forward.1} parent=1 // pred_check_branch
      %21 = sbr.rel (0) target = $region9
    $region8: #{spectral_net_forward.1} parent=1 // pred_region
      _
    $region9: #{spectral_net_forward.1} parent=1 // pred_fallthru
      _
    // Predicated region
    $region10: #{spectral_net_forward.1} parent=1 // pred_check
      _
    $region11: #{spectral_net_forward.1} parent=1 // pred_check_branch
      %23 = sbr.rel (0) target = $region13
    $region12: #{spectral_net_forward.1} parent=1 // pred_region
      _
    $region13: #{spectral_net_forward.1} parent=1 // pred_fallthru
      _
    // Predicated region
    $region14: #{spectral_net_forward.1} parent=1 // pred_check
      _
    $region15: #{spectral_net_forward.1} parent=1 // pred_check_branch
      %25 = sbr.rel (0) target = $region17
    $region16: #{spectral_net_forward.1} parent=1 // pred_region
      _
    $region17: #{spectral_net_forward.1} parent=1 // pred_fallthru
      _
    // Predicated region
    $region18: #{spectral_net_forward.1} parent=1 // pred_check
      _
    $region19: #{spectral_net_forward.1} parent=1 // pred_check_branch
      %27 = sbr.rel (0) target = $region21
    $region20: #{spectral_net_forward.1} parent=1 // pred_region
      _
    $region21: #{spectral_net_forward.1} parent=1 // pred_fallthru
      _
    // Predicated region
    $region22: #{spectral_net_forward.1} parent=1 // pred_check
      _
    $region23: #{spectral_net_forward.1} parent=1 // pred_check_branch
      %29 = sbr.rel (0) target = $region25
    $region24: #{spectral_net_forward.1} parent=1 // pred_region
      %s31 = ssub.s32 6144, 6144
      %32 = vsyncadd [#allocation3], %s31
      %s33 = sshll.u32 [#allocation2], 4
      %s34 = int_to_ptr.vmem [resolvable:$true] %s33
      %39 = dma.hbm_to_vmem [thread:$0]  %s5, 6144, %s34, [#allocation3], 128, 128, 8
    $region25: #{spectral_net_forward.1} parent=1 // pred_fallthru
      _
    // Predicated region
    $region26: #{spectral_net_forward.1} parent=1 // pred_check
      _
    $region27: #{spectral_net_forward.1} parent=1 // pred_check_branch
      %41 = sbr.rel (0) target = $region29
    $region28: #{spectral_net_forward.1} parent=1 // pred_region
      _
    $region29: #{spectral_net_forward.1} parent=1 // pred_fallthru
      _
    // Predicated region
    $region30: #{spectral_net_forward.1} parent=1 // pred_check
      _
    $region31: #{spectral_net_forward.1} parent=1 // pred_check_branch
      %43 = sbr.rel (0) target = $region33
    $region32: #{spectral_net_forward.1} parent=1 // pred_region
      %s45 = ssub.s32 3072, 3072
      %46 = vsyncadd [#allocation5], %s45
      %s47 = sshll.u32 [#allocation4], 4
      %s48 = int_to_ptr.vmem [resolvable:$true] %s47
      %53 = dma.hbm_to_vmem [thread:$0]  %s7, 3072, %s48, [#allocation5], 128, 128, 8
    $region33: #{spectral_net_forward.1} parent=1 // pred_fallthru
      _
    // Predicated region
    $region34: #{spectral_net_forward.1} parent=1 // pred_check
      _
    $region35: #{spectral_net_forward.1} parent=1 // pred_check_branch
      %55 = sbr.rel (0) target = $region37
    $region36: #{spectral_net_forward.1} parent=1 // pred_region
      _
    $region37: #{spectral_net_forward.1} parent=1 // pred_fallthru
      _
    // Predicated region
    $region38: #{spectral_net_forward.1} parent=1 // pred_check
      _
    $region39: #{spectral_net_forward.1} parent=1 // pred_check_branch
      %57 = sbr.rel (0) target = $region41
    $region40: #{spectral_net_forward.1} parent=1 // pred_region
      _
    $region41: #{spectral_net_forward.1} parent=1 // pred_fallthru
      _
    // Predicated region
    $region42: #{spectral_net_forward.1} parent=1 // pred_check
      _
    $region43: #{spectral_net_forward.1} parent=1 // pred_check_branch
      %59 = sbr.rel (0) target = $region45
    $region44: #{spectral_net_forward.1} parent=1 // pred_region
      _
    $region45: #{spectral_net_forward.1} parent=1 // pred_fallthru
      _
    // Predicated region
    $region46: #{spectral_net_forward.1} parent=1 // pred_check
      _
    $region47: #{spectral_net_forward.1} parent=1 // pred_check_branch
      %61 = sbr.rel (0) target = $region49
    $region48: #{spectral_net_forward.1} parent=1 // pred_region
      %62 = dma.done [#allocation3], 6144
    $region49: #{spectral_net_forward.1} parent=1 // pred_fallthru
      _
    // Predicated region
    $region50: #{spectral_net_forward.1} parent=1 // pred_check
      _
    $region51: #{spectral_net_forward.1} parent=1 // pred_check_branch
      %64 = sbr.rel (0) target = $region53
    $region52: #{spectral_net_forward.1} parent=1 // pred_region
      %65 = dma.done [#allocation5], 3072
    $region53: #{spectral_net_forward.1} parent=1 // pred_fallthru
      _
    %v66 = vld [vmem:[%s2] sm:$0xff]
    %vm67 = vcmp.ge.s32.totalorder %v66, 1
    %vm68 = vcmp.ge.s32.totalorder %v66, 2
    %v69 = vld [vmem:[%s0] sm:$0xff]
    %v71 = vrot.slane %v69, 7
    %vm73 = vcmask 1040384
    %v74 = vsel %vm73, 0.0, %v71
    %v75 = vsel %vm67, 1, 0
    %76 = vset.pattern.permute.xlu0 0
    %77 = vperm.xlu0 %76, %v75
    %v78 = vpop.permute.xlu0 %77
    %vm79 = vcmp.eq.s32.totalorder %v78, 1
    %v80 = vsel %vm79, %v74, 0.0
    %v81 = vrot.slane %v69, 6
    %vm83 = vcmask 1041408
    %v84 = vsel %vm83, 0.0, %v81
    %v85 = vsel %vm68, 1, 0
    %86 = vset.pattern.permute.xlu0 0
    %87 = vperm.xlu0 %86, %v85
    %v88 = vpop.permute.xlu0 %87
    %vm89 = vcmp.eq.s32.totalorder %v88, 1
    %v90 = vsel %vm89, %v84, 0.0
    %92 = vrot.lane.b32.xlu0 %v80, 2
    %v93 = vpop.permute.xlu0 %92
    %vm95 = vcmask 15360
    %v96 = vsel %vm95, %v90, %v93
    %v97 = vld [vmem:[%s3] sm:$0xf]
    %v98 = vld [vmem:[%s4] sm:$0x1]
    %v100 = vlaneseq
    %v101 = vshrl.u32 %v100, 7
    %v102 = vsub.s32 0, %v101
    %v103 = vrot.slane %v98, %v102
    %vm105 = vcmask 31744
    %v107 = vsel %vm105, %v96, 0
    %vm109 = vcmask 1043456
    %v111 = vsel %vm109, %v97, 0
    %113 = vmatprep.subr.mxu0 0.0
    %114 = vmatpush1.msra.mxu0 0.0
    %115 = vmatprep.subr.mxu0 0.0
    %116 = vmatpush1.msra.mxu0 0.0
    %117 = vmatprep.subr.mxu0 0.0
    %118 = vmatpush1.msra.mxu0 0.0
    %119 = vmatprep.subr.mxu0 0.0
    %120 = vmatpush1.msra.mxu0 0.0
    %121 = vmatprep.subr.mxu0 0.0
    %122 = vmatpush1.msra.mxu0 0.0
    %123 = vmatprep.subr.mxu0 0.0
    %124 = vmatpush1.msra.mxu0 0.0
    %125 = vmatprep.subr.mxu0 0.0
    %126 = vmatpush1.msra.mxu0 0.0
    %127 = vmatprep.subr.mxu0 0.0
    %128 = vmatpush1.msra.mxu0 0.0
    %129 = vmatprep.subr.mxu0 0.0
    %130 = vmatpush1.msra.mxu0 0.0
    %131 = vmatprep.subr.mxu0 0.0
    %132 = vmatpush1.msra.mxu0 0.0
    %133 = vmatprep.subr.mxu0 0.0
    %134 = vmatpush1.msra.mxu0 0.0
    %135 = vmatprep.subr.mxu0 0.0
    %136 = vmatpush1.msra.mxu0 0.0
    %137 = vmatprep.subr.mxu0 0.0
    %138 = vmatpush1.msra.mxu0 0.0
    %139 = vmatprep.subr.mxu0 0.0
    %140 = vmatpush1.msra.mxu0 0.0
    %141 = vmatprep.subr.mxu0 0.0
    %142 = vmatpush1.msra.mxu0 0.0
    %143 = vmatprep.subr.mxu0 0.0
    %144 = vmatpush1.msra.mxu0 %v111
    %145 = vmatprep.subr.mxu0 0.0
    %146 = vmatpush2.msra.mxu0 0.0
    %147 = vmatprep.subr.mxu0 0.0
    %148 = vmatpush2.msra.mxu0 0.0
    %149 = vmatprep.subr.mxu0 0.0
    %150 = vmatpush2.msra.mxu0 0.0
    %151 = vmatprep.subr.mxu0 0.0
    %152 = vmatpush2.msra.mxu0 0.0
    %153 = vmatprep.subr.mxu0 0.0
    %154 = vmatpush2.msra.mxu0 0.0
    %155 = vmatprep.subr.mxu0 0.0
    %156 = vmatpush2.msra.mxu0 0.0
    %157 = vmatprep.subr.mxu0 0.0
    %158 = vmatpush2.msra.mxu0 0.0
    %159 = vmatprep.subr.mxu0 0.0
    %160 = vmatpush2.msra.mxu0 0.0
    %161 = vmatprep.subr.mxu0 0.0
    %162 = vmatpush2.msra.mxu0 0.0
    %163 = vmatprep.subr.mxu0 0.0
    %164 = vmatpush2.msra.mxu0 0.0
    %165 = vmatprep.subr.mxu0 0.0
    %166 = vmatpush2.msra.mxu0 0.0
    %167 = vmatprep.subr.mxu0 0.0
    %168 = vmatpush2.msra.mxu0 0.0
    %169 = vmatprep.subr.mxu0 0.0
    %170 = vmatpush2.msra.mxu0 0.0
    %171 = vmatprep.subr.mxu0 0.0
    %172 = vmatpush2.msra.mxu0 0.0
    %173 = vmatprep.subr.mxu0 0.0
    %174 = vmatpush2.msra.mxu0 0.0
    %175 = vmatprep.subr.mxu0 0.0
    %176 = vmatpush2.msra.mxu0 0.0
    %177 = vmatprep.mubr.f32.mxu0 0.0
    %178 = vmatmul.mubr.f32.gmra.mxu0 %v107
    %v179 = vpop.f32.mrf.mxu0
    %v180 = vadd.f32 %v103, %v179
    %v181 = vpop.f32.mrf.mxu0
    %182 = vdwg.mxu0
    %v183 = vld [vmem:[%s6] sm:$0x1]
    %v185 = vrot.slane %v180, 7
    %v187 = vsel %vm73, 0.0, %v185
    %v188 = vsel %vm79, %v187, 0.0
    %189 = vrot.lane.b32.xlu0 %v180, 64
    %v190 = vpop.permute.xlu0 %189
    %vm192 = vcmask 523264
    %v193 = vsel %vm192, %v188, %v190
    %v194 = vld [vmem:[#allocation2] sm:$0xff]
    %v195 = vld [vmem:[#allocation2 + $0x8] sm:$0xff]
    %v196 = vld [vmem:[#allocation2 + $0x10] sm:$0xff]
    %v197 = vld [vmem:[#allocation2 + $0x18] sm:$0xff]
    %v198 = vld [vmem:[#allocation2 + $0x20] sm:$0xff]
    %v199 = vld [vmem:[#allocation2 + $0x28] sm:$0xff]
    %v200 = vld [vmem:[#allocation2 + $0x30] sm:$0xff]
    %v201 = vld [vmem:[#allocation2 + $0x38] sm:$0xff]
    %v202 = vld [vmem:[#allocation2 + $0x40] sm:$0xff]
    %v203 = vld [vmem:[#allocation2 + $0x48] sm:$0xff]
    %v204 = vld [vmem:[#allocation2 + $0x50] sm:$0xff]
    %v205 = vld [vmem:[#allocation2 + $0x58] sm:$0xff]
    %v206 = vld [vmem:[#allocation2 + $0x60] sm:$0xff]
    %v207 = vld [vmem:[#allocation2 + $0x68] sm:$0xff]
    %v208 = vld [vmem:[#allocation2 + $0x70] sm:$0xff]
    %v209 = vld [vmem:[#allocation2 + $0x78] sm:$0xff]
    %v211 = vlaneseq
    %v212 = vshrl.u32 %v211, 7
    %v213 = vsub.s32 0, %v212
    %v214 = vrot.slane %v183, %v213
    %216 = vmatprep.subr.mxu0 0.0
    %217 = vmatpush1.msra.mxu0 %v209
    %218 = vmatprep.subr.mxu0 0.0
    %219 = vmatpush1.msra.mxu0 %v208
    %220 = vmatprep.subr.mxu0 0.0
    %221 = vmatpush1.msra.mxu0 %v207
    %222 = vmatprep.subr.mxu0 0.0
    %223 = vmatpush1.msra.mxu0 %v206
    %224 = vmatprep.subr.mxu0 0.0
    %225 = vmatpush1.msra.mxu0 %v205
    %226 = vmatprep.subr.mxu0 0.0
    %227 = vmatpush1.msra.mxu0 %v204
    %228 = vmatprep.subr.mxu0 0.0
    %229 = vmatpush1.msra.mxu0 %v203
    %230 = vmatprep.subr.mxu0 0.0
    %231 = vmatpush1.msra.mxu0 %v202
    %232 = vmatprep.subr.mxu0 0.0
    %233 = vmatpush1.msra.mxu0 %v201
    %234 = vmatprep.subr.mxu0 0.0
    %235 = vmatpush1.msra.mxu0 %v200
    %236 = vmatprep.subr.mxu0 0.0
    %237 = vmatpush1.msra.mxu0 %v199
    %238 = vmatprep.subr.mxu0 0.0
    %239 = vmatpush1.msra.mxu0 %v198
    %240 = vmatprep.subr.mxu0 0.0
    %241 = vmatpush1.msra.mxu0 %v197
    %242 = vmatprep.subr.mxu0 0.0
    %243 = vmatpush1.msra.mxu0 %v196
    %244 = vmatprep.subr.mxu0 0.0
    %245 = vmatpush1.msra.mxu0 %v195
    %246 = vmatprep.subr.mxu0 0.0
    %247 = vmatpush1.msra.mxu0 %v194
    %248 = vmatprep.subr.mxu0 0.0
    %249 = vmatpush2.msra.mxu0 0.0
    %250 = vmatprep.subr.mxu0 0.0
    %251 = vmatpush2.msra.mxu0 0.0
    %252 = vmatprep.subr.mxu0 0.0
    %253 = vmatpush2.msra.mxu0 0.0
    %254 = vmatprep.subr.mxu0 0.0
    %255 = vmatpush2.msra.mxu0 0.0
    %256 = vmatprep.subr.mxu0 0.0
    %257 = vmatpush2.msra.mxu0 0.0
    %258 = vmatprep.subr.mxu0 0.0
    %259 = vmatpush2.msra.mxu0 0.0
    %260 = vmatprep.subr.mxu0 0.0
    %261 = vmatpush2.msra.mxu0 0.0
    %262 = vmatprep.subr.mxu0 0.0
    %263 = vmatpush2.msra.mxu0 0.0
    %264 = vmatprep.subr.mxu0 0.0
    %265 = vmatpush2.msra.mxu0 0.0
    %266 = vmatprep.subr.mxu0 0.0
    %267 = vmatpush2.msra.mxu0 0.0
    %268 = vmatprep.subr.mxu0 0.0
    %269 = vmatpush2.msra.mxu0 0.0
    %270 = vmatprep.subr.mxu0 0.0
    %271 = vmatpush2.msra.mxu0 0.0
    %272 = vmatprep.subr.mxu0 0.0
    %273 = vmatpush2.msra.mxu0 0.0
    %274 = vmatprep.subr.mxu0 0.0
    %275 = vmatpush2.msra.mxu0 0.0
    %276 = vmatprep.subr.mxu0 0.0
    %277 = vmatpush2.msra.mxu0 0.0
    %278 = vmatprep.subr.mxu0 0.0
    %279 = vmatpush2.msra.mxu0 0.0
    %280 = vmatprep.mubr.f32.mxu0 0.0
    %281 = vmatmul.mubr.f32.gmra.mxu0 %v193
    %v282 = vpop.f32.mrf.mxu0
    %v283 = vadd.f32 %v214, %v282
    %v284 = vpop.f32.mrf.mxu0
    %285 = vdwg.mxu0
    %v286 = vtanh.pop %v283
    %v287 = vxor.u32 %v283, 2147483648
    %v288 = vmul.f32 %v287, 1.442695
    %v289 = vpow.pop %v288
    %v290 = vadd.f32 %v289, 1.0
    %v291 = vrcp.pop %v290
    %v292 = vmul.f32 1.0, %v291
    %294 = vrot.lane.b32.xlu0 %v292, 64
    %v295 = vpop.permute.xlu0 %294
    %v297 = vmul.f32 %v286, %v295
    %v298 = vld [vmem:[#allocation4] sm:$0xff]
    %v299 = vld [vmem:[#allocation4 + $0x8] sm:$0xff]
    %v300 = vld [vmem:[#allocation4 + $0x10] sm:$0xff]
    %v301 = vld [vmem:[#allocation4 + $0x18] sm:$0xff]
    %v302 = vld [vmem:[#allocation4 + $0x20] sm:$0xff]
    %v303 = vld [vmem:[#allocation4 + $0x28] sm:$0xff]
    %v304 = vld [vmem:[#allocation4 + $0x30] sm:$0xff]
    %v305 = vld [vmem:[#allocation4 + $0x38] sm:$0xff]
    %v306 = vld [vmem:[%s8] sm:$0x1]
    %v308 = vlaneseq
    %v309 = vshrl.u32 %v308, 7
    %v310 = vsub.s32 0, %v309
    %v311 = vrot.slane %v306, %v310
    %v314 = vsel %vm192, %v297, 0
    %316 = vmatprep.subr.mxu0 0.0
    %317 = vmatpush1.msra.mxu0 0.0
    %318 = vmatprep.subr.mxu0 0.0
    %319 = vmatpush1.msra.mxu0 0.0
    %320 = vmatprep.subr.mxu0 0.0
    %321 = vmatpush1.msra.mxu0 0.0
    %322 = vmatprep.subr.mxu0 0.0
    %323 = vmatpush1.msra.mxu0 0.0
    %324 = vmatprep.subr.mxu0 0.0
    %325 = vmatpush1.msra.mxu0 0.0
    %326 = vmatprep.subr.mxu0 0.0
    %327 = vmatpush1.msra.mxu0 0.0
    %328 = vmatprep.subr.mxu0 0.0
    %329 = vmatpush1.msra.mxu0 0.0
    %330 = vmatprep.subr.mxu0 0.0
    %331 = vmatpush1.msra.mxu0 0.0
    %332 = vmatprep.subr.mxu0 0.0
    %333 = vmatpush1.msra.mxu0 %v305
    %334 = vmatprep.subr.mxu0 0.0
    %335 = vmatpush1.msra.mxu0 %v304
    %336 = vmatprep.subr.mxu0 0.0
    %337 = vmatpush1.msra.mxu0 %v303
    %338 = vmatprep.subr.mxu0 0.0
    %339 = vmatpush1.msra.mxu0 %v302
    %340 = vmatprep.subr.mxu0 0.0
    %341 = vmatpush1.msra.mxu0 %v301
    %342 = vmatprep.subr.mxu0 0.0
    %343 = vmatpush1.msra.mxu0 %v300
    %344 = vmatprep.subr.mxu0 0.0
    %345 = vmatpush1.msra.mxu0 %v299
    %346 = vmatprep.subr.mxu0 0.0
    %347 = vmatpush1.msra.mxu0 %v298
    %348 = vmatprep.subr.mxu0 0.0
    %349 = vmatpush2.msra.mxu0 0.0
    %350 = vmatprep.subr.mxu0 0.0
    %351 = vmatpush2.msra.mxu0 0.0
    %352 = vmatprep.subr.mxu0 0.0
    %353 = vmatpush2.msra.mxu0 0.0
    %354 = vmatprep.subr.mxu0 0.0
    %355 = vmatpush2.msra.mxu0 0.0
    %356 = vmatprep.subr.mxu0 0.0
    %357 = vmatpush2.msra.mxu0 0.0
    %358 = vmatprep.subr.mxu0 0.0
    %359 = vmatpush2.msra.mxu0 0.0
    %360 = vmatprep.subr.mxu0 0.0
    %361 = vmatpush2.msra.mxu0 0.0
    %362 = vmatprep.subr.mxu0 0.0
    %363 = vmatpush2.msra.mxu0 0.0
    %364 = vmatprep.subr.mxu0 0.0
    %365 = vmatpush2.msra.mxu0 0.0
    %366 = vmatprep.subr.mxu0 0.0
    %367 = vmatpush2.msra.mxu0 0.0
    %368 = vmatprep.subr.mxu0 0.0
    %369 = vmatpush2.msra.mxu0 0.0
    %370 = vmatprep.subr.mxu0 0.0
    %371 = vmatpush2.msra.mxu0 0.0
    %372 = vmatprep.subr.mxu0 0.0
    %373 = vmatpush2.msra.mxu0 0.0
    %374 = vmatprep.subr.mxu0 0.0
    %375 = vmatpush2.msra.mxu0 0.0
    %376 = vmatprep.subr.mxu0 0.0
    %377 = vmatpush2.msra.mxu0 0.0
    %378 = vmatprep.subr.mxu0 0.0
    %379 = vmatpush2.msra.mxu0 0.0
    %380 = vmatprep.mubr.f32.mxu0 0.0
    %381 = vmatmul.mubr.f32.gmra.mxu0 %v314
    %v382 = vpop.f32.mrf.mxu0
    %v383 = vadd.f32 %v311, %v382
    %v384 = vpop.f32.mrf.mxu0
    %385 = vdwg.mxu0
    %v386 = vadd.f32 %v180, %v383
    %v387 = vadd.f32 %v383, 0.0
    %s388 = scalar_lea.vmem %s6, 1
    %v389 = vld [vmem:[%s388] sm:$0x1]
    %v391 = vrot.slane %v386, 6
    %v393 = vsel %vm83, 0.0, %v391
    %v394 = vsel %vm89, %v393, 0.0
    %395 = vrot.lane.b32.xlu0 %v386, 64
    %v396 = vpop.permute.xlu0 %395
    %v398 = vsel %vm192, %v394, %v396
    %s399 = scalar_lea.vmem [#allocation2], 128
    %v400 = vld [vmem:[%s399] sm:$0xff]
    %v401 = vld [vmem:[%s399 + $0x8] sm:$0xff]
    %v402 = vld [vmem:[%s399 + $0x10] sm:$0xff]
    %v403 = vld [vmem:[%s399 + $0x18] sm:$0xff]
    %v404 = vld [vmem:[%s399 + $0x20] sm:$0xff]
    %v405 = vld [vmem:[%s399 + $0x28] sm:$0xff]
    %v406 = vld [vmem:[%s399 + $0x30] sm:$0xff]
    %v407 = vld [vmem:[%s399 + $0x38] sm:$0xff]
    %v408 = vld [vmem:[%s399 + $0x40] sm:$0xff]
    %v409 = vld [vmem:[%s399 + $0x48] sm:$0xff]
    %v410 = vld [vmem:[%s399 + $0x50] sm:$0xff]
    %v411 = vld [vmem:[%s399 + $0x58] sm:$0xff]
    %v412 = vld [vmem:[%s399 + $0x60] sm:$0xff]
    %v413 = vld [vmem:[%s399 + $0x68] sm:$0xff]
    %v414 = vld [vmem:[%s399 + $0x70] sm:$0xff]
    %v415 = vld [vmem:[%s399 + $0x78] sm:$0xff]
    %v417 = vlaneseq
    %v418 = vshrl.u32 %v417, 7
    %v419 = vsub.s32 0, %v418
    %v420 = vrot.slane %v389, %v419
    %422 = vmatprep.subr.mxu0 0.0
    %423 = vmatpush1.msra.mxu0 %v415
    %424 = vmatprep.subr.mxu0 0.0
    %425 = vmatpush1.msra.mxu0 %v414
    %426 = vmatprep.subr.mxu0 0.0
    %427 = vmatpush1.msra.mxu0 %v413
    %428 = vmatprep.subr.mxu0 0.0
    %429 = vmatpush1.msra.mxu0 %v412
    %430 = vmatprep.subr.mxu0 0.0
    %431 = vmatpush1.msra.mxu0 %v411
    %432 = vmatprep.subr.mxu0 0.0
    %433 = vmatpush1.msra.mxu0 %v410
    %434 = vmatprep.subr.mxu0 0.0
    %435 = vmatpush1.msra.mxu0 %v409
    %436 = vmatprep.subr.mxu0 0.0
    %437 = vmatpush1.msra.mxu0 %v408
    %438 = vmatprep.subr.mxu0 0.0
    %439 = vmatpush1.msra.mxu0 %v407
    %440 = vmatprep.subr.mxu0 0.0
    %441 = vmatpush1.msra.mxu0 %v406
    %442 = vmatprep.subr.mxu0 0.0
    %443 = vmatpush1.msra.mxu0 %v405
    %444 = vmatprep.subr.mxu0 0.0
    %445 = vmatpush1.msra.mxu0 %v404
    %446 = vmatprep.subr.mxu0 0.0
    %447 = vmatpush1.msra.mxu0 %v403
    %448 = vmatprep.subr.mxu0 0.0
    %449 = vmatpush1.msra.mxu0 %v402
    %450 = vmatprep.subr.mxu0 0.0
    %451 = vmatpush1.msra.mxu0 %v401
    %452 = vmatprep.subr.mxu0 0.0
    %453 = vmatpush1.msra.mxu0 %v400
    %454 = vmatprep.subr.mxu0 0.0
    %455 = vmatpush2.msra.mxu0 0.0
    %456 = vmatprep.subr.mxu0 0.0
    %457 = vmatpush2.msra.mxu0 0.0
    %458 = vmatprep.subr.mxu0 0.0
    %459 = vmatpush2.msra.mxu0 0.0
    %460 = vmatprep.subr.mxu0 0.0
    %461 = vmatpush2.msra.mxu0 0.0
    %462 = vmatprep.subr.mxu0 0.0
    %463 = vmatpush2.msra.mxu0 0.0
    %464 = vmatprep.subr.mxu0 0.0
    %465 = vmatpush2.msra.mxu0 0.0
    %466 = vmatprep.subr.mxu0 0.0
    %467 = vmatpush2.msra.mxu0 0.0
    %468 = vmatprep.subr.mxu0 0.0
    %469 = vmatpush2.msra.mxu0 0.0
    %470 = vmatprep.subr.mxu0 0.0
    %471 = vmatpush2.msra.mxu0 0.0
    %472 = vmatprep.subr.mxu0 0.0
    %473 = vmatpush2.msra.mxu0 0.0
    %474 = vmatprep.subr.mxu0 0.0
    %475 = vmatpush2.msra.mxu0 0.0
    %476 = vmatprep.subr.mxu0 0.0
    %477 = vmatpush2.msra.mxu0 0.0
    %478 = vmatprep.subr.mxu0 0.0
    %479 = vmatpush2.msra.mxu0 0.0
    %480 = vmatprep.subr.mxu0 0.0
    %481 = vmatpush2.msra.mxu0 0.0
    %482 = vmatprep.subr.mxu0 0.0
    %483 = vmatpush2.msra.mxu0 0.0
    %484 = vmatprep.subr.mxu0 0.0
    %485 = vmatpush2.msra.mxu0 0.0
    %486 = vmatprep.mubr.f32.mxu0 0.0
    %487 = vmatmul.mubr.f32.gmra.mxu0 %v398
    %v488 = vpop.f32.mrf.mxu0
    %v489 = vadd.f32 %v420, %v488
    %v490 = vpop.f32.mrf.mxu0
    %491 = vdwg.mxu0
    %v492 = vtanh.pop %v489
    %v493 = vxor.u32 %v489, 2147483648
    %v494 = vmul.f32 %v493, 1.442695
    %v495 = vpow.pop %v494
    %v496 = vadd.f32 %v495, 1.0
    %v497 = vrcp.pop %v496
    %v498 = vmul.f32 1.0, %v497
    %500 = vrot.lane.b32.xlu0 %v498, 64
    %v501 = vpop.permute.xlu0 %500
    %v503 = vmul.f32 %v492, %v501
    %s504 = scalar_lea.vmem [#allocation4], 64
    %v505 = vld [vmem:[%s504] sm:$0xff]
    %v506 = vld [vmem:[%s504 + $0x8] sm:$0xff]
    %v507 = vld [vmem:[%s504 + $0x10] sm:$0xff]
    %v508 = vld [vmem:[%s504 + $0x18] sm:$0xff]
    %v509 = vld [vmem:[%s504 + $0x20] sm:$0xff]
    %v510 = vld [vmem:[%s504 + $0x28] sm:$0xff]
    %v511 = vld [vmem:[%s504 + $0x30] sm:$0xff]
    %v512 = vld [vmem:[%s504 + $0x38] sm:$0xff]
    %s513 = scalar_lea.vmem %s8, 1
    %v514 = vld [vmem:[%s513] sm:$0x1]
    %v516 = vlaneseq
    %v517 = vshrl.u32 %v516, 7
    %v518 = vsub.s32 0, %v517
    %v519 = vrot.slane %v514, %v518
    %v522 = vsel %vm192, %v503, 0
    %524 = vmatprep.subr.mxu0 0.0
    %525 = vmatpush1.msra.mxu0 0.0
    %526 = vmatprep.subr.mxu0 0.0
    %527 = vmatpush1.msra.mxu0 0.0
    %528 = vmatprep.subr.mxu0 0.0
    %529 = vmatpush1.msra.mxu0 0.0
    %530 = vmatprep.subr.mxu0 0.0
    %531 = vmatpush1.msra.mxu0 0.0
    %532 = vmatprep.subr.mxu0 0.0
    %533 = vmatpush1.msra.mxu0 0.0
    %534 = vmatprep.subr.mxu0 0.0
    %535 = vmatpush1.msra.mxu0 0.0
    %536 = vmatprep.subr.mxu0 0.0
    %537 = vmatpush1.msra.mxu0 0.0
    %538 = vmatprep.subr.mxu0 0.0
    %539 = vmatpush1.msra.mxu0 0.0
    %540 = vmatprep.subr.mxu0 0.0
    %541 = vmatpush1.msra.mxu0 %v512
    %542 = vmatprep.subr.mxu0 0.0
    %543 = vmatpush1.msra.mxu0 %v511
    %544 = vmatprep.subr.mxu0 0.0
    %545 = vmatpush1.msra.mxu0 %v510
    %546 = vmatprep.subr.mxu0 0.0
    %547 = vmatpush1.msra.mxu0 %v509
    %548 = vmatprep.subr.mxu0 0.0
    %549 = vmatpush1.msra.mxu0 %v508
    %550 = vmatprep.subr.mxu0 0.0
    %551 = vmatpush1.msra.mxu0 %v507
    %552 = vmatprep.subr.mxu0 0.0
    %553 = vmatpush1.msra.mxu0 %v506
    %554 = vmatprep.subr.mxu0 0.0
    %555 = vmatpush1.msra.mxu0 %v505
    %556 = vmatprep.subr.mxu0 0.0
    %557 = vmatpush2.msra.mxu0 0.0
    %558 = vmatprep.subr.mxu0 0.0
    %559 = vmatpush2.msra.mxu0 0.0
    %560 = vmatprep.subr.mxu0 0.0
    %561 = vmatpush2.msra.mxu0 0.0
    %562 = vmatprep.subr.mxu0 0.0
    %563 = vmatpush2.msra.mxu0 0.0
    %564 = vmatprep.subr.mxu0 0.0
    %565 = vmatpush2.msra.mxu0 0.0
    %566 = vmatprep.subr.mxu0 0.0
    %567 = vmatpush2.msra.mxu0 0.0
    %568 = vmatprep.subr.mxu0 0.0
    %569 = vmatpush2.msra.mxu0 0.0
    %570 = vmatprep.subr.mxu0 0.0
    %571 = vmatpush2.msra.mxu0 0.0
    %572 = vmatprep.subr.mxu0 0.0
    %573 = vmatpush2.msra.mxu0 0.0
    %574 = vmatprep.subr.mxu0 0.0
    %575 = vmatpush2.msra.mxu0 0.0
    %576 = vmatprep.subr.mxu0 0.0
    %577 = vmatpush2.msra.mxu0 0.0
    %578 = vmatprep.subr.mxu0 0.0
    %579 = vmatpush2.msra.mxu0 0.0
    %580 = vmatprep.subr.mxu0 0.0
    %581 = vmatpush2.msra.mxu0 0.0
    %582 = vmatprep.subr.mxu0 0.0
    %583 = vmatpush2.msra.mxu0 0.0
    %584 = vmatprep.subr.mxu0 0.0
    %585 = vmatpush2.msra.mxu0 0.0
    %586 = vmatprep.subr.mxu0 0.0
    %587 = vmatpush2.msra.mxu0 0.0
    %588 = vmatprep.mubr.f32.mxu0 0.0
    %589 = vmatmul.mubr.f32.gmra.mxu0 %v522
    %v590 = vpop.f32.mrf.mxu0
    %v591 = vadd.f32 %v519, %v590
    %v592 = vpop.f32.mrf.mxu0
    %593 = vdwg.mxu0
    %v594 = vadd.f32 %v386, %v591
    %v595 = vadd.f32 %v387, %v591
    %s596 = scalar_lea.vmem %s6, 2
    %v597 = vld [vmem:[%s596] sm:$0x1]
    %s598 = scalar_lea.vmem [#allocation2], 256
    %v599 = vld [vmem:[%s598 + $0x40] sm:$0xff]
    %v600 = vld [vmem:[%s598 + $0x48] sm:$0xff]
    %v601 = vld [vmem:[%s598 + $0x50] sm:$0xff]
    %v602 = vld [vmem:[%s598 + $0x58] sm:$0xff]
    %v603 = vld [vmem:[%s598 + $0x60] sm:$0xff]
    %v604 = vld [vmem:[%s598 + $0x68] sm:$0xff]
    %v605 = vld [vmem:[%s598 + $0x70] sm:$0xff]
    %v606 = vld [vmem:[%s598 + $0x78] sm:$0xff]
    %v608 = vlaneseq
    %v609 = vshrl.u32 %v608, 7
    %v610 = vsub.s32 0, %v609
    %v611 = vrot.slane %v597, %v610
    %v614 = vsel %vm192, %v594, 0
    %616 = vmatprep.subr.mxu0 0.0
    %617 = vmatpush1.msra.mxu0 0.0
    %618 = vmatprep.subr.mxu0 0.0
    %619 = vmatpush1.msra.mxu0 0.0
    %620 = vmatprep.subr.mxu0 0.0
    %621 = vmatpush1.msra.mxu0 0.0
    %622 = vmatprep.subr.mxu0 0.0
    %623 = vmatpush1.msra.mxu0 0.0
    %624 = vmatprep.subr.mxu0 0.0
    %625 = vmatpush1.msra.mxu0 0.0
    %626 = vmatprep.subr.mxu0 0.0
    %627 = vmatpush1.msra.mxu0 0.0
    %628 = vmatprep.subr.mxu0 0.0
    %629 = vmatpush1.msra.mxu0 0.0
    %630 = vmatprep.subr.mxu0 0.0
    %631 = vmatpush1.msra.mxu0 0.0
    %632 = vmatprep.subr.mxu0 0.0
    %633 = vmatpush1.msra.mxu0 %v606
    %634 = vmatprep.subr.mxu0 0.0
    %635 = vmatpush1.msra.mxu0 %v605
    %636 = vmatprep.subr.mxu0 0.0
    %637 = vmatpush1.msra.mxu0 %v604
    %638 = vmatprep.subr.mxu0 0.0
    %639 = vmatpush1.msra.mxu0 %v603
    %640 = vmatprep.subr.mxu0 0.0
    %641 = vmatpush1.msra.mxu0 %v602
    %642 = vmatprep.subr.mxu0 0.0
    %643 = vmatpush1.msra.mxu0 %v601
    %644 = vmatprep.subr.mxu0 0.0
    %645 = vmatpush1.msra.mxu0 %v600
    %646 = vmatprep.subr.mxu0 0.0
    %647 = vmatpush1.msra.mxu0 %v599
    %648 = vmatprep.subr.mxu0 0.0
    %649 = vmatpush2.msra.mxu0 0.0
    %650 = vmatprep.subr.mxu0 0.0
    %651 = vmatpush2.msra.mxu0 0.0
    %652 = vmatprep.subr.mxu0 0.0
    %653 = vmatpush2.msra.mxu0 0.0
    %654 = vmatprep.subr.mxu0 0.0
    %655 = vmatpush2.msra.mxu0 0.0
    %656 = vmatprep.subr.mxu0 0.0
    %657 = vmatpush2.msra.mxu0 0.0
    %658 = vmatprep.subr.mxu0 0.0
    %659 = vmatpush2.msra.mxu0 0.0
    %660 = vmatprep.subr.mxu0 0.0
    %661 = vmatpush2.msra.mxu0 0.0
    %662 = vmatprep.subr.mxu0 0.0
    %663 = vmatpush2.msra.mxu0 0.0
    %664 = vmatprep.subr.mxu0 0.0
    %665 = vmatpush2.msra.mxu0 0.0
    %666 = vmatprep.subr.mxu0 0.0
    %667 = vmatpush2.msra.mxu0 0.0
    %668 = vmatprep.subr.mxu0 0.0
    %669 = vmatpush2.msra.mxu0 0.0
    %670 = vmatprep.subr.mxu0 0.0
    %671 = vmatpush2.msra.mxu0 0.0
    %672 = vmatprep.subr.mxu0 0.0
    %673 = vmatpush2.msra.mxu0 0.0
    %674 = vmatprep.subr.mxu0 0.0
    %675 = vmatpush2.msra.mxu0 0.0
    %676 = vmatprep.subr.mxu0 0.0
    %677 = vmatpush2.msra.mxu0 0.0
    %678 = vmatprep.subr.mxu0 0.0
    %679 = vmatpush2.msra.mxu0 0.0
    %680 = vmatprep.mubr.f32.mxu0 0.0
    %681 = vmatmul.mubr.f32.gmra.mxu0 %v614
    %v682 = vpop.f32.mrf.mxu0
    %v683 = vadd.f32 %v611, %v682
    %v684 = vpop.f32.mrf.mxu0
    %685 = vdwg.mxu0
    %v686 = vtanh.pop %v683
    %v687 = vxor.u32 %v683, 2147483648
    %v688 = vmul.f32 %v687, 1.442695
    %v689 = vpow.pop %v688
    %v690 = vadd.f32 %v689, 1.0
    %v691 = vrcp.pop %v690
    %v692 = vmul.f32 1.0, %v691
    %694 = vrot.lane.b32.xlu0 %v692, 64
    %v695 = vpop.permute.xlu0 %694
    %v697 = vmul.f32 %v686, %v695
    %s698 = scalar_lea.vmem [#allocation4], 128
    %v699 = vld [vmem:[%s698] sm:$0xff]
    %v700 = vld [vmem:[%s698 + $0x8] sm:$0xff]
    %v701 = vld [vmem:[%s698 + $0x10] sm:$0xff]
    %v702 = vld [vmem:[%s698 + $0x18] sm:$0xff]
    %v703 = vld [vmem:[%s698 + $0x20] sm:$0xff]
    %v704 = vld [vmem:[%s698 + $0x28] sm:$0xff]
    %v705 = vld [vmem:[%s698 + $0x30] sm:$0xff]
    %v706 = vld [vmem:[%s698 + $0x38] sm:$0xff]
    %s707 = scalar_lea.vmem %s8, 2
    %v708 = vld [vmem:[%s707] sm:$0x1]
    %v710 = vlaneseq
    %v711 = vshrl.u32 %v710, 7
    %v712 = vsub.s32 0, %v711
    %v713 = vrot.slane %v708, %v712
    %v716 = vsel %vm192, %v697, 0
    %718 = vmatprep.subr.mxu0 0.0
    %719 = vmatpush1.msra.mxu0 0.0
    %720 = vmatprep.subr.mxu0 0.0
    %721 = vmatpush1.msra.mxu0 0.0
    %722 = vmatprep.subr.mxu0 0.0
    %723 = vmatpush1.msra.mxu0 0.0
    %724 = vmatprep.subr.mxu0 0.0
    %725 = vmatpush1.msra.mxu0 0.0
    %726 = vmatprep.subr.mxu0 0.0
    %727 = vmatpush1.msra.mxu0 0.0
    %728 = vmatprep.subr.mxu0 0.0
    %729 = vmatpush1.msra.mxu0 0.0
    %730 = vmatprep.subr.mxu0 0.0
    %731 = vmatpush1.msra.mxu0 0.0
    %732 = vmatprep.subr.mxu0 0.0
    %733 = vmatpush1.msra.mxu0 0.0
    %734 = vmatprep.subr.mxu0 0.0
    %735 = vmatpush1.msra.mxu0 %v706
    %736 = vmatprep.subr.mxu0 0.0
    %737 = vmatpush1.msra.mxu0 %v705
    %738 = vmatprep.subr.mxu0 0.0
    %739 = vmatpush1.msra.mxu0 %v704
    %740 = vmatprep.subr.mxu0 0.0
    %741 = vmatpush1.msra.mxu0 %v703
    %742 = vmatprep.subr.mxu0 0.0
    %743 = vmatpush1.msra.mxu0 %v702
    %744 = vmatprep.subr.mxu0 0.0
    %745 = vmatpush1.msra.mxu0 %v701
    %746 = vmatprep.subr.mxu0 0.0
    %747 = vmatpush1.msra.mxu0 %v700
    %748 = vmatprep.subr.mxu0 0.0
    %749 = vmatpush1.msra.mxu0 %v699
    %750 = vmatprep.subr.mxu0 0.0
    %751 = vmatpush2.msra.mxu0 0.0
    %752 = vmatprep.subr.mxu0 0.0
    %753 = vmatpush2.msra.mxu0 0.0
    %754 = vmatprep.subr.mxu0 0.0
    %755 = vmatpush2.msra.mxu0 0.0
    %756 = vmatprep.subr.mxu0 0.0
    %757 = vmatpush2.msra.mxu0 0.0
    %758 = vmatprep.subr.mxu0 0.0
    %759 = vmatpush2.msra.mxu0 0.0
    %760 = vmatprep.subr.mxu0 0.0
    %761 = vmatpush2.msra.mxu0 0.0
    %762 = vmatprep.subr.mxu0 0.0
    %763 = vmatpush2.msra.mxu0 0.0
    %764 = vmatprep.subr.mxu0 0.0
    %765 = vmatpush2.msra.mxu0 0.0
    %766 = vmatprep.subr.mxu0 0.0
    %767 = vmatpush2.msra.mxu0 0.0
    %768 = vmatprep.subr.mxu0 0.0
    %769 = vmatpush2.msra.mxu0 0.0
    %770 = vmatprep.subr.mxu0 0.0
    %771 = vmatpush2.msra.mxu0 0.0
    %772 = vmatprep.subr.mxu0 0.0
    %773 = vmatpush2.msra.mxu0 0.0
    %774 = vmatprep.subr.mxu0 0.0
    %775 = vmatpush2.msra.mxu0 0.0
    %776 = vmatprep.subr.mxu0 0.0
    %777 = vmatpush2.msra.mxu0 0.0
    %778 = vmatprep.subr.mxu0 0.0
    %779 = vmatpush2.msra.mxu0 0.0
    %780 = vmatprep.subr.mxu0 0.0
    %781 = vmatpush2.msra.mxu0 0.0
    %782 = vmatprep.mubr.f32.mxu0 0.0
    %783 = vmatmul.mubr.f32.gmra.mxu0 %v716
    %v784 = vpop.f32.mrf.mxu0
    %v785 = vadd.f32 %v713, %v784
    %v786 = vpop.f32.mrf.mxu0
    %787 = vdwg.mxu0
    %v788 = vadd.f32 %v595, %v785
    %v789 = vmax.f32 %v788, 0.0
    %v790 = vld [vmem:[%s9] sm:$0xff]
    %v791 = vld [vmem:[%s10] sm:$0x1]
    %v793 = vlaneseq
    %v794 = vshrl.u32 %v793, 7
    %v795 = vsub.s32 0, %v794
    %v796 = vrot.slane %v791, %v795
    %799 = vrot.lane.b32.xlu0 %v789, 64
    %v800 = vpop.permute.xlu0 %799
    %vm801 = vcmask 64512
    %v802 = vsel %vm801, %v800, 0
    %804 = vmatprep.subr.mxu0 0.0
    %805 = vmatpush1.msra.mxu0 0.0
    %806 = vmatprep.subr.mxu0 0.0
    %807 = vmatpush1.msra.mxu0 0.0
    %808 = vmatprep.subr.mxu0 0.0
    %809 = vmatpush1.msra.mxu0 0.0
    %810 = vmatprep.subr.mxu0 0.0
    %811 = vmatpush1.msra.mxu0 0.0
    %812 = vmatprep.subr.mxu0 0.0
    %813 = vmatpush1.msra.mxu0 0.0
    %814 = vmatprep.subr.mxu0 0.0
    %815 = vmatpush1.msra.mxu0 0.0
    %816 = vmatprep.subr.mxu0 0.0
    %817 = vmatpush1.msra.mxu0 0.0
    %818 = vmatprep.subr.mxu0 0.0
    %819 = vmatpush1.msra.mxu0 0.0
    %820 = vmatprep.subr.mxu0 0.0
    %821 = vmatpush1.msra.mxu0 0.0
    %822 = vmatprep.subr.mxu0 0.0
    %823 = vmatpush1.msra.mxu0 0.0
    %824 = vmatprep.subr.mxu0 0.0
    %825 = vmatpush1.msra.mxu0 0.0
    %826 = vmatprep.subr.mxu0 0.0
    %827 = vmatpush1.msra.mxu0 0.0
    %828 = vmatprep.subr.mxu0 0.0
    %829 = vmatpush1.msra.mxu0 0.0
    %830 = vmatprep.subr.mxu0 0.0
    %831 = vmatpush1.msra.mxu0 0.0
    %832 = vmatprep.subr.mxu0 0.0
    %833 = vmatpush1.msra.mxu0 0.0
    %834 = vmatprep.subr.mxu0 0.0
    %835 = vmatpush1.msra.mxu0 %v790
    %836 = vmatprep.subr.mxu0 0.0
    %837 = vmatpush2.msra.mxu0 0.0
    %838 = vmatprep.subr.mxu0 0.0
    %839 = vmatpush2.msra.mxu0 0.0
    %840 = vmatprep.subr.mxu0 0.0
    %841 = vmatpush2.msra.mxu0 0.0
    %842 = vmatprep.subr.mxu0 0.0
    %843 = vmatpush2.msra.mxu0 0.0
    %844 = vmatprep.subr.mxu0 0.0
    %845 = vmatpush2.msra.mxu0 0.0
    %846 = vmatprep.subr.mxu0 0.0
    %847 = vmatpush2.msra.mxu0 0.0
    %848 = vmatprep.subr.mxu0 0.0
    %849 = vmatpush2.msra.mxu0 0.0
    %850 = vmatprep.subr.mxu0 0.0
    %851 = vmatpush2.msra.mxu0 0.0
    %852 = vmatprep.subr.mxu0 0.0
    %853 = vmatpush2.msra.mxu0 0.0
    %854 = vmatprep.subr.mxu0 0.0
    %855 = vmatpush2.msra.mxu0 0.0
    %856 = vmatprep.subr.mxu0 0.0
    %857 = vmatpush2.msra.mxu0 0.0
    %858 = vmatprep.subr.mxu0 0.0
    %859 = vmatpush2.msra.mxu0 0.0
    %860 = vmatprep.subr.mxu0 0.0
    %861 = vmatpush2.msra.mxu0 0.0
    %862 = vmatprep.subr.mxu0 0.0
    %863 = vmatpush2.msra.mxu0 0.0
    %864 = vmatprep.subr.mxu0 0.0
    %865 = vmatpush2.msra.mxu0 0.0
    %866 = vmatprep.subr.mxu0 0.0
    %867 = vmatpush2.msra.mxu0 0.0
    %868 = vmatprep.mubr.f32.mxu0 0.0
    %869 = vmatmul.mubr.f32.gmra.mxu0 %v802
    %v870 = vpop.f32.mrf.mxu0
    %v871 = vadd.f32 %v796, %v870
    %v872 = vpop.f32.mrf.mxu0
    %873 = vdwg.mxu0
    %v874 = vmax.f32 %v871, 0.0
    %s875 = scalar_lea.vmem %s9, 8
    %v876 = vld [vmem:[%s875] sm:$0xff]
    %s877 = scalar_lea.vmem %s10, 1
    %v878 = vld [vmem:[%s877] sm:$0x1]
    %v880 = vlaneseq
    %v881 = vshrl.u32 %v880, 7
    %v882 = vsub.s32 0, %v881
    %v883 = vrot.slane %v878, %v882
    %v886 = vsel %vm801, %v874, 0
    %888 = vmatprep.subr.mxu0 0.0
    %889 = vmatpush1.msra.mxu0 0.0
    %890 = vmatprep.subr.mxu0 0.0
    %891 = vmatpush1.msra.mxu0 0.0
    %892 = vmatprep.subr.mxu0 0.0
    %893 = vmatpush1.msra.mxu0 0.0
    %894 = vmatprep.subr.mxu0 0.0
    %895 = vmatpush1.msra.mxu0 0.0
    %896 = vmatprep.subr.mxu0 0.0
    %897 = vmatpush1.msra.mxu0 0.0
    %898 = vmatprep.subr.mxu0 0.0
    %899 = vmatpush1.msra.mxu0 0.0
    %900 = vmatprep.subr.mxu0 0.0
    %901 = vmatpush1.msra.mxu0 0.0
    %902 = vmatprep.subr.mxu0 0.0
    %903 = vmatpush1.msra.mxu0 0.0
    %904 = vmatprep.subr.mxu0 0.0
    %905 = vmatpush1.msra.mxu0 0.0
    %906 = vmatprep.subr.mxu0 0.0
    %907 = vmatpush1.msra.mxu0 0.0
    %908 = vmatprep.subr.mxu0 0.0
    %909 = vmatpush1.msra.mxu0 0.0
    %910 = vmatprep.subr.mxu0 0.0
    %911 = vmatpush1.msra.mxu0 0.0
    %912 = vmatprep.subr.mxu0 0.0
    %913 = vmatpush1.msra.mxu0 0.0
    %914 = vmatprep.subr.mxu0 0.0
    %915 = vmatpush1.msra.mxu0 0.0
    %916 = vmatprep.subr.mxu0 0.0
    %917 = vmatpush1.msra.mxu0 0.0
    %918 = vmatprep.subr.mxu0 0.0
    %919 = vmatpush1.msra.mxu0 %v876
    %920 = vmatprep.subr.mxu0 0.0
    %921 = vmatpush2.msra.mxu0 0.0
    %922 = vmatprep.subr.mxu0 0.0
    %923 = vmatpush2.msra.mxu0 0.0
    %924 = vmatprep.subr.mxu0 0.0
    %925 = vmatpush2.msra.mxu0 0.0
    %926 = vmatprep.subr.mxu0 0.0
    %927 = vmatpush2.msra.mxu0 0.0
    %928 = vmatprep.subr.mxu0 0.0
    %929 = vmatpush2.msra.mxu0 0.0
    %930 = vmatprep.subr.mxu0 0.0
    %931 = vmatpush2.msra.mxu0 0.0
    %932 = vmatprep.subr.mxu0 0.0
    %933 = vmatpush2.msra.mxu0 0.0
    %934 = vmatprep.subr.mxu0 0.0
    %935 = vmatpush2.msra.mxu0 0.0
    %936 = vmatprep.subr.mxu0 0.0
    %937 = vmatpush2.msra.mxu0 0.0
    %938 = vmatprep.subr.mxu0 0.0
    %939 = vmatpush2.msra.mxu0 0.0
    %940 = vmatprep.subr.mxu0 0.0
    %941 = vmatpush2.msra.mxu0 0.0
    %942 = vmatprep.subr.mxu0 0.0
    %943 = vmatpush2.msra.mxu0 0.0
    %944 = vmatprep.subr.mxu0 0.0
    %945 = vmatpush2.msra.mxu0 0.0
    %946 = vmatprep.subr.mxu0 0.0
    %947 = vmatpush2.msra.mxu0 0.0
    %948 = vmatprep.subr.mxu0 0.0
    %949 = vmatpush2.msra.mxu0 0.0
    %950 = vmatprep.subr.mxu0 0.0
    %951 = vmatpush2.msra.mxu0 0.0
    %952 = vmatprep.mubr.f32.mxu0 0.0
    %953 = vmatmul.mubr.f32.gmra.mxu0 %v886
    %v954 = vpop.f32.mrf.mxu0
    %v955 = vadd.f32 %v883, %v954
    %v956 = vpop.f32.mrf.mxu0
    %957 = vdwg.mxu0
    %v958 = vld [vmem:[%s1] sm:$0xff]
    %v959 = vmul.f32 %v955, %v955
    %v960 = vsel %vm105, %v959, 0.0
    %961 = vadd.xlane.f32.xlu0 %v960
    %v962 = vpop.xlane.xlu0 %961
    %v963 = vrsqrt.pop %v962
    %v964 = vmul.f32 %v955, %v958
    %v965 = vsel %vm105, %v964, 0.0
    %966 = vadd.xlane.f32.xlu0 %v965
    %v967 = vpop.xlane.xlu0 %966
    %v968 = vmul.f32 %v967, %v963
    %970 = vrot.lane.b32.xlu0 %v959, 124
    %v971 = vpop.permute.xlu0 %970
    %v973 = vsel %vm105, %v971, 0.0
    %974 = vadd.xlane.f32.xlu0 %v973
    %v975 = vpop.xlane.xlu0 %974
    %v976 = vrsqrt.pop %v975
    %978 = vrot.lane.b32.xlu0 %v958, 4
    %v979 = vpop.permute.xlu0 %978
    %v981 = vmul.f32 %v955, %v979
    %983 = vrot.lane.b32.xlu0 %v981, 124
    %v984 = vpop.permute.xlu0 %983
    %v986 = vsel %vm105, %v984, 0.0
    %987 = vadd.xlane.f32.xlu0 %v986
    %v988 = vpop.xlane.xlu0 %987
    %v989 = vmul.f32 %v988, %v976
    %vm990 = vcmask 7168
    %v991 = vsel %vm990, %v968, %v989
    %v993 = vrot.slane %v991, 1
    %v995 = vmul.f32 %v991, %v993
    %v997 = vrot.slane %v995, 2
    %v999 = vmul.f32 %v995, %v997
    %v1001 = vrot.slane %v999, 3
    %v1003 = vsel %vm73, %v999, %v1001
    %vm1004 = vcmask 9216
    %1005 = vst.msk [vmem:[%s11] sm:$0x3] %vm1004, %v1003
    // Predicated region
    $region54: #{spectral_net_forward.1} parent=1 // pred_check
      _
    $region55: #{spectral_net_forward.1} parent=1 // pred_check_branch
      %1007 = sbr.rel (0) target = $region57
    $region56: #{spectral_net_forward.1} parent=1 // pred_region
      _
    $region57: #{spectral_net_forward.1} parent=1 // pred_fallthru
      _
    // Predicated region
    $region58: #{spectral_net_forward.1} parent=1 // pred_check
      _
    $region59: #{spectral_net_forward.1} parent=1 // pred_check_branch
      %1009 = sbr.rel (0) target = $region61
    $region60: #{spectral_net_forward.1} parent=1 // pred_region
      _
    $region61: #{spectral_net_forward.1} parent=1 // pred_fallthru
      _
    %1010 = vsyncpa [#allocation3], 1
    %1011 = vsyncpa [#allocation5], 1

</llo_original>
